<compile_context>
chip_gen: v5e
topology: v5e:2x2
jax: 0.10.0
libtpu: 0.0.40
codegen_flags: <defaults>
</compile_context>

<pallas_src>
import functools

import jax
import jax.numpy as jnp
from jax.experimental import pallas as pl
from jax.experimental.pallas import tpu as pltpu

# ---- small, self-consistent hyper-params (scaled-down d_model=768 default) ----
B = 2          # batch
S = 8          # sequence length
D = 32         # d_model
H = 4          # n_heads
DH = D // H    # head dim
FF = 64        # dim_ff
EPS = 1e-5
SCALE = 1.0 / (DH ** 0.5)


def kws_kernel(x_ref, mu_ref, sg_ref,
               wqkv_ref, bqkv_ref, wo_ref, bo_ref,
               w1_ref, b1_ref, w2_ref, b2_ref,
               o_ref, *, bb):
    # Hoist weight loads out of the (static) per-batch loop.
    wqkv = wqkv_ref[...]   # (D, 3D)
    bqkv = bqkv_ref[...]   # (1, 3D)
    wo = wo_ref[...]       # (D, D)
    bo = bo_ref[...]       # (1, D)
    w1 = w1_ref[...]       # (D, FF)
    b1 = b1_ref[...]       # (1, FF)
    w2 = w2_ref[...]       # (FF, D)
    b2 = b2_ref[...]       # (1, D)

    # bb == 1 on v7x (one batch element per grid step, one per TensorCore);
    # bb == B on v5e/v6e (batch grid folded into a single invocation).
    for b in range(bb):
        x = x_ref[b].astype(jnp.float32)       # (S, D)
        mu_v = mu_ref[b].astype(jnp.float32)   # (1, D)
        sg_v = sg_ref[b].astype(jnp.float32)   # (1, D)

        def adain(z):
            # mean / biased variance over the sequence axis (dim=1 in PyTorch)
            mu_z = jnp.mean(z, axis=0, keepdims=True)
            var_z = jnp.mean((z - mu_z) ** 2, axis=0, keepdims=True)
            sig_z = jnp.sqrt(var_z) + EPS                       # sqrt(var)+eps (spec)
            inv_sig = pl.reciprocal(sig_z, approx=False)        # 1 recip row, then mul
            return sg_v * ((z - mu_z) * inv_sig) + mu_v

        # ---------------- AdaIN 1 ----------------
        xn = adain(x)

        # ---------------- Multi-head self-attention ----------------
        # Fused QKV projection: one matmul, one bias-add pass.
        qkv = jnp.dot(xn, wqkv, preferred_element_type=jnp.float32) + bqkv  # (S, 3D)

        # Per-head attention; output projection accumulated per head so no
        # concatenate is needed.
        attn = jnp.zeros((S, D), jnp.float32)
        for h in range(H):                       # static unrolled loop over heads
            q_h = qkv[:, h * DH:(h + 1) * DH]                    # (S, DH)
            k_h = qkv[:, D + h * DH:D + (h + 1) * DH]            # (S, DH)
            v_h = qkv[:, 2 * D + h * DH:2 * D + (h + 1) * DH]    # (S, DH)

            s = jnp.dot(q_h, k_h.T, preferred_element_type=jnp.float32) * SCALE
            s = s - jnp.max(s, axis=-1, keepdims=True)
            p = jnp.exp(s)
            p = p * pl.reciprocal(jnp.sum(p, axis=-1, keepdims=True), approx=False)

            ctx = jnp.dot(p, v_h, preferred_element_type=jnp.float32)       # (S, DH)
            # accumulate this head's contribution through its slice of Wo
            attn = attn + jnp.dot(ctx, wo[h * DH:(h + 1) * DH, :],
                                  preferred_element_type=jnp.float32)

        # residual (dropout1 = identity in eval mode)
        x1 = x + attn + bo

        # ---------------- AdaIN 2 ----------------
        xn2 = adain(x1)

        # ---------------- Feed-forward ----------------
        hdn = jnp.maximum(
            jnp.dot(xn2, w1, preferred_element_type=jnp.float32) + b1, 0.0)
        ff = jnp.dot(hdn, w2, preferred_element_type=jnp.float32) + b2

        # residual (dropout2 = identity in eval mode)
        o_ref[b] = (x1 + ff).astype(o_ref.dtype)


def _per_step_batch():
    """Batch elements handled per grid step.

    Fold the whole batch into one grid step on single-TensorCore chips
    (v5e/v6e) to avoid per-step overhead; keep one element per step on
    multi-TC chips (v7x / v4) so the "parallel" batch axis is core-sharded.
    """
    try:
        kind = jax.devices()[0].device_kind.lower()
    except Exception:
        return 1
    if "v5" in kind or "v6" in kind:
        return B
    return 1


def keyword_adaptive_module(x, mu_v, sigma_v, params):
    (wqkv, bqkv, wo, bo, w1, b1, w2, b2) = params

    bb = _per_step_batch()
    grid = (B // bb,)

    full2d = lambda a: pl.BlockSpec(a.shape, lambda b: (0, 0))
    kernel = functools.partial(kws_kernel, bb=bb)

    return pl.pallas_call(
        kernel,
        out_shape=jax.ShapeDtypeStruct((B, S, D), x.dtype),
        grid_spec=pltpu.PrefetchScalarGridSpec(
            num_scalar_prefetch=0,
            grid=grid,
            in_specs=[
                pl.BlockSpec((bb, S, D), lambda b: (b, 0, 0)),   # x
                pl.BlockSpec((bb, 1, D), lambda b: (b, 0, 0)),   # mu_v
                pl.BlockSpec((bb, 1, D), lambda b: (b, 0, 0)),   # sigma_v
                full2d(wqkv), full2d(bqkv),                      # fused QKV
                full2d(wo), full2d(bo),
                full2d(w1), full2d(b1),
                full2d(w2), full2d(b2),
            ],
            out_specs=pl.BlockSpec((bb, S, D), lambda b: (b, 0, 0)),
        ),
        compiler_params=pltpu.CompilerParams(
            dimension_semantics=("parallel",) if bb == 1 else ("arbitrary",)),
    )(x, mu_v, sigma_v, wqkv, bqkv, wo, bo, w1, b1, w2, b2)


# ------------------------- pure-JAX reference -------------------------
def reference(x, mu_v, sigma_v, params):
    (wq, bq, wk, bk, wv, bv, wo, bo, w1, b1, w2, b2) = params

    def adain(z):
        mu_z = jnp.mean(z, axis=1, keepdims=True)
        sig_z = jnp.sqrt(jnp.var(z, axis=1, keepdims=True)) + EPS  # unbiased=False
        return sigma_v * ((z - mu_z) / sig_z) + mu_v

    xn = adain(x)
    q = xn @ wq + bq
    k = xn @ wk + bk
    v = xn @ wv + bv
    qh = q.reshape(B, S, H, DH).transpose(0, 2, 1, 3)
    kh = k.reshape(B, S, H, DH).transpose(0, 2, 1, 3)
    vh = v.reshape(B, S, H, DH).transpose(0, 2, 1, 3)
    s = jnp.einsum('bhsd,bhtd->bhst', qh, kh) * SCALE
    p = jax.nn.softmax(s, axis=-1)
    o = jnp.einsum('bhst,bhtd->bhsd', p, vh).transpose(0, 2, 1, 3).reshape(B, S, D)
    attn = o @ wo + bo
    x1 = x + attn
    xn2 = adain(x1)
    ff = jnp.maximum(xn2 @ w1 + b1, 0.0) @ w2 + b2
    return x1 + ff


if __name__ == "__main__":
    key = jax.random.PRNGKey(0)
    ks = jax.random.split(key, 16)

    x = jax.random.normal(ks[0], (B, S, D), jnp.float32)
    mu_v = jax.random.normal(ks[1], (B, 1, D), jnp.float32) * 0.1
    sigma_v = 1.0 + 0.1 * jax.random.normal(ks[2], (B, 1, D), jnp.float32)

    def w(k, shape, scale=0.05):
        return scale * jax.random.normal(k, shape, jnp.float32)

    wq, bq = w(ks[3], (D, D)), w(ks[4], (1, D))      # already in x@W form
    wk, bk = w(ks[5], (D, D)), w(ks[6], (1, D))
    wv, bv = w(ks[7], (D, D)), w(ks[8], (1, D))
    wo, bo = w(ks[9], (D, D)), w(ks[10], (1, D))
    w1, b1 = w(ks[11], (D, FF)), w(ks[12], (1, FF))
    w2, b2 = w(ks[13], (FF, D)), w(ks[14], (1, D))

    ref_params = (wq, bq, wk, bk, wv, bv, wo, bo, w1, b1, w2, b2)

    # Fuse QKV weights/biases for the kernel (one (D,3D) matmul in-kernel).
    wqkv = jnp.concatenate([wq, wk, wv], axis=1)     # (D, 3D)
    bqkv = jnp.concatenate([bq, bk, bv], axis=1)     # (1, 3D)
    kern_params = (wqkv, bqkv, wo, bo, w1, b1, w2, b2)

    out = keyword_adaptive_module(x, mu_v, sigma_v, kern_params)
    out = jax.block_until_ready(out)

    ref = reference(x, mu_v, sigma_v, ref_params)
    assert out.shape == (B, S, D)
    assert jnp.allclose(out, ref, atol=1e-4, rtol=1e-4), \
        f"max err {jnp.max(jnp.abs(out - ref))}"
    print("KERNEL_OK")
</pallas_src>

<mosaic_0001>
module attributes {stable_mosaic.version = 11 : i64} {
  func.func @kws_kernel(%arg0: i32, %arg1: memref<1x8x32xf32, #tpu.memory_space<vmem>>, %arg2: memref<1x1x32xf32, #tpu.memory_space<vmem>>, %arg3: memref<1x1x32xf32, #tpu.memory_space<vmem>>, %arg4: memref<32x96xf32, #tpu.memory_space<vmem>>, %arg5: memref<1x96xf32, #tpu.memory_space<vmem>>, %arg6: memref<32x32xf32, #tpu.memory_space<vmem>>, %arg7: memref<1x32xf32, #tpu.memory_space<vmem>>, %arg8: memref<32x64xf32, #tpu.memory_space<vmem>>, %arg9: memref<1x64xf32, #tpu.memory_space<vmem>>, %arg10: memref<64x32xf32, #tpu.memory_space<vmem>>, %arg11: memref<1x32xf32, #tpu.memory_space<vmem>>, %arg12: memref<1x8x32xf32, #tpu.memory_space<vmem>>) attributes {dimension_semantics = [#tpu.dimension_semantics<parallel>], iteration_bounds = array<i64: 2>, scalar_prefetch = 0 : i64, scratch_operands = 0 : i64, tpu.core_type = #tpu.core_type<tc>, window_params = [{transform_indices = @transform_0, window_bounds = array<i64: 1, 8, 32>}, {transform_indices = @transform_1, window_bounds = array<i64: 1, 1, 32>}, {transform_indices = @transform_2, window_bounds = array<i64: 1, 1, 32>}, {pipeline_mode = #tpu.pipeline_mode<synchronous>, transform_indices = @transform_3, window_bounds = array<i64: 32, 96>}, {pipeline_mode = #tpu.pipeline_mode<synchronous>, transform_indices = @transform_4, window_bounds = array<i64: 1, 96>}, {pipeline_mode = #tpu.pipeline_mode<synchronous>, transform_indices = @transform_5, window_bounds = array<i64: 32, 32>}, {pipeline_mode = #tpu.pipeline_mode<synchronous>, transform_indices = @transform_6, window_bounds = array<i64: 1, 32>}, {pipeline_mode = #tpu.pipeline_mode<synchronous>, transform_indices = @transform_7, window_bounds = array<i64: 32, 64>}, {pipeline_mode = #tpu.pipeline_mode<synchronous>, transform_indices = @transform_8, window_bounds = array<i64: 1, 64>}, {pipeline_mode = #tpu.pipeline_mode<synchronous>, transform_indices = @transform_9, window_bounds = array<i64: 64, 32>}, {pipeline_mode = #tpu.pipeline_mode<synchronous>, transform_indices = @transform_10, window_bounds = array<i64: 1, 32>}, {transform_indices = @transform_11, window_bounds = array<i64: 1, 8, 32>}]} {
    %c0 = arith.constant 0 : index
    %c0_0 = arith.constant 0 : index
    %0 = vector.load %arg4[%c0, %c0_0] : memref<32x96xf32, #tpu.memory_space<vmem>>, vector<32x96xf32>
    %c0_1 = arith.constant 0 : index
    %c0_2 = arith.constant 0 : index
    %1 = vector.load %arg5[%c0_1, %c0_2] : memref<1x96xf32, #tpu.memory_space<vmem>>, vector<1x96xf32>
    %c0_3 = arith.constant 0 : index
    %c0_4 = arith.constant 0 : index
    %2 = vector.load %arg6[%c0_3, %c0_4] : memref<32x32xf32, #tpu.memory_space<vmem>>, vector<32x32xf32>
    %c0_5 = arith.constant 0 : index
    %c0_6 = arith.constant 0 : index
    %3 = vector.load %arg7[%c0_5, %c0_6] : memref<1x32xf32, #tpu.memory_space<vmem>>, vector<1x32xf32>
    %c0_7 = arith.constant 0 : index
    %c0_8 = arith.constant 0 : index
    %4 = vector.load %arg8[%c0_7, %c0_8] : memref<32x64xf32, #tpu.memory_space<vmem>>, vector<32x64xf32>
    %c0_9 = arith.constant 0 : index
    %c0_10 = arith.constant 0 : index
    %5 = vector.load %arg9[%c0_9, %c0_10] : memref<1x64xf32, #tpu.memory_space<vmem>>, vector<1x64xf32>
    %c0_11 = arith.constant 0 : index
    %c0_12 = arith.constant 0 : index
    %6 = vector.load %arg10[%c0_11, %c0_12] : memref<64x32xf32, #tpu.memory_space<vmem>>, vector<64x32xf32>
    %c0_13 = arith.constant 0 : index
    %c0_14 = arith.constant 0 : index
    %7 = vector.load %arg11[%c0_13, %c0_14] : memref<1x32xf32, #tpu.memory_space<vmem>>, vector<1x32xf32>
    %c0_15 = arith.constant 0 : index
    %c0_16 = arith.constant 0 : index
    %c0_17 = arith.constant 0 : index
    %8 = vector.load %arg1[%c0_15, %c0_16, %c0_17] : memref<1x8x32xf32, #tpu.memory_space<vmem>>, vector<1x8x32xf32>
    %9 = vector.shape_cast %8 : vector<1x8x32xf32> to vector<8x32xf32>
    %c0_18 = arith.constant 0 : index
    %c0_19 = arith.constant 0 : index
    %c0_20 = arith.constant 0 : index
    %10 = vector.load %arg2[%c0_18, %c0_19, %c0_20] : memref<1x1x32xf32, #tpu.memory_space<vmem>>, vector<1x1x32xf32>
    %11 = vector.shape_cast %10 : vector<1x1x32xf32> to vector<1x32xf32>
    %c0_21 = arith.constant 0 : index
    %c0_22 = arith.constant 0 : index
    %c0_23 = arith.constant 0 : index
    %12 = vector.load %arg3[%c0_21, %c0_22, %c0_23] : memref<1x1x32xf32, #tpu.memory_space<vmem>>, vector<1x1x32xf32>
    %13 = vector.shape_cast %12 : vector<1x1x32xf32> to vector<1x32xf32>
    %cst = arith.constant dense<0.000000e+00> : vector<32xf32>
    %14 = vector.multi_reduction <add>, %9, %cst [0] : vector<8x32xf32> to vector<32xf32>
    %15 = vector.shape_cast %14 : vector<32xf32> to vector<1x32xf32>
    %cst_24 = arith.constant 8.000000e+00 : f32
    %16 = vector.broadcast %cst_24 : f32 to vector<1x32xf32>
    %17 = arith.divf %15, %16 : vector<1x32xf32>
    %18 = vector.broadcast %17 : vector<1x32xf32> to vector<8x32xf32>
    %19 = arith.subf %9, %18 : vector<8x32xf32>
    %20 = arith.mulf %19, %19 : vector<8x32xf32>
    %cst_25 = arith.constant dense<0.000000e+00> : vector<32xf32>
    %21 = vector.multi_reduction <add>, %20, %cst_25 [0] : vector<8x32xf32> to vector<32xf32>
    %22 = vector.shape_cast %21 : vector<32xf32> to vector<1x32xf32>
    %cst_26 = arith.constant 8.000000e+00 : f32
    %23 = vector.broadcast %cst_26 : f32 to vector<1x32xf32>
    %24 = arith.divf %22, %23 : vector<1x32xf32>
    %25 = math.sqrt %24 : vector<1x32xf32>
    %cst_27 = arith.constant 9.99999974E-6 : f32
    %26 = vector.broadcast %cst_27 : f32 to vector<1x32xf32>
    %27 = arith.addf %25, %26 : vector<1x32xf32>
    %28 = tpu.reciprocal %27 : vector<1x32xf32> -> vector<1x32xf32>
    %29 = vector.broadcast %17 : vector<1x32xf32> to vector<8x32xf32>
    %30 = arith.subf %9, %29 : vector<8x32xf32>
    %31 = vector.broadcast %28 : vector<1x32xf32> to vector<8x32xf32>
    %32 = arith.mulf %30, %31 : vector<8x32xf32>
    %33 = vector.broadcast %13 : vector<1x32xf32> to vector<8x32xf32>
    %34 = arith.mulf %33, %32 : vector<8x32xf32>
    %35 = vector.broadcast %11 : vector<1x32xf32> to vector<8x32xf32>
    %36 = arith.addf %34, %35 : vector<8x32xf32>
    %cst_28 = arith.constant dense<0.000000e+00> : vector<8x96xf32>
    %37 = tpu.matmul %36, %0, %cst_28 {dimension_numbers = #tpu.dot_dimension_numbers<[1], [0], [0], [1], [0, 0, 1, 1], [], []>} : vector<8x32xf32>, vector<32x96xf32>, vector<8x96xf32> -> vector<8x96xf32>
    %38 = vector.broadcast %1 : vector<1x96xf32> to vector<8x96xf32>
    %39 = arith.addf %37, %38 : vector<8x96xf32>
    %cst_29 = arith.constant 0.000000e+00 : f32
    %40 = vector.broadcast %cst_29 : f32 to vector<8x32xf32>
    %41 = vector.extract_strided_slice %39 {offsets = [0, 0], sizes = [8, 8], strides = [1, 1]} : vector<8x96xf32> to vector<8x8xf32>
    %42 = vector.extract_strided_slice %39 {offsets = [0, 32], sizes = [8, 8], strides = [1, 1]} : vector<8x96xf32> to vector<8x8xf32>
    %43 = vector.extract_strided_slice %39 {offsets = [0, 64], sizes = [8, 8], strides = [1, 1]} : vector<8x96xf32> to vector<8x8xf32>
    %44 = tpu.transpose %42, [1, 0] : vector<8x8xf32> -> vector<8x8xf32>
    %cst_30 = arith.constant dense<0.000000e+00> : vector<8x8xf32>
    %45 = tpu.matmul %41, %44, %cst_30 {dimension_numbers = #tpu.dot_dimension_numbers<[1], [0], [0], [1], [0, 0, 1, 1], [], []>} : vector<8x8xf32>, vector<8x8xf32>, vector<8x8xf32> -> vector<8x8xf32>
    %cst_31 = arith.constant 0.353553385 : f32
    %46 = vector.broadcast %cst_31 : f32 to vector<8x8xf32>
    %47 = arith.mulf %45, %46 : vector<8x8xf32>
    %cst_32 = arith.constant dense<0xFF800000> : vector<8xf32>
    %48 = vector.multi_reduction <maximumf>, %47, %cst_32 [1] : vector<8x8xf32> to vector<8xf32>
    %49 = vector.shape_cast %48 : vector<8xf32> to vector<8x1xf32>
    %50 = vector.broadcast %49 : vector<8x1xf32> to vector<8x8xf32>
    %51 = arith.subf %47, %50 : vector<8x8xf32>
    %52 = math.exp %51 : vector<8x8xf32>
    %cst_33 = arith.constant dense<0.000000e+00> : vector<8xf32>
    %53 = vector.multi_reduction <add>, %52, %cst_33 [1] : vector<8x8xf32> to vector<8xf32>
    %54 = vector.shape_cast %53 : vector<8xf32> to vector<8x1xf32>
    %55 = tpu.reciprocal %54 : vector<8x1xf32> -> vector<8x1xf32>
    %56 = vector.broadcast %55 : vector<8x1xf32> to vector<8x8xf32>
    %57 = arith.mulf %52, %56 : vector<8x8xf32>
    %cst_34 = arith.constant dense<0.000000e+00> : vector<8x8xf32>
    %58 = tpu.matmul %57, %43, %cst_34 {dimension_numbers = #tpu.dot_dimension_numbers<[1], [0], [0], [1], [0, 0, 1, 1], [], []>} : vector<8x8xf32>, vector<8x8xf32>, vector<8x8xf32> -> vector<8x8xf32>
    %59 = vector.extract_strided_slice %2 {offsets = [0, 0], sizes = [8, 32], strides = [1, 1]} : vector<32x32xf32> to vector<8x32xf32>
    %cst_35 = arith.constant dense<0.000000e+00> : vector<8x32xf32>
    %60 = tpu.matmul %58, %59, %cst_35 {dimension_numbers = #tpu.dot_dimension_numbers<[1], [0], [0], [1], [0, 0, 1, 1], [], []>} : vector<8x8xf32>, vector<8x32xf32>, vector<8x32xf32> -> vector<8x32xf32>
    %61 = arith.addf %40, %60 : vector<8x32xf32>
    %62 = vector.extract_strided_slice %39 {offsets = [0, 8], sizes = [8, 8], strides = [1, 1]} : vector<8x96xf32> to vector<8x8xf32>
    %63 = vector.extract_strided_slice %39 {offsets = [0, 40], sizes = [8, 8], strides = [1, 1]} : vector<8x96xf32> to vector<8x8xf32>
    %64 = vector.extract_strided_slice %39 {offsets = [0, 72], sizes = [8, 8], strides = [1, 1]} : vector<8x96xf32> to vector<8x8xf32>
    %65 = tpu.transpose %63, [1, 0] : vector<8x8xf32> -> vector<8x8xf32>
    %cst_36 = arith.constant dense<0.000000e+00> : vector<8x8xf32>
    %66 = tpu.matmul %62, %65, %cst_36 {dimension_numbers = #tpu.dot_dimension_numbers<[1], [0], [0], [1], [0, 0, 1, 1], [], []>} : vector<8x8xf32>, vector<8x8xf32>, vector<8x8xf32> -> vector<8x8xf32>
    %cst_37 = arith.constant 0.353553385 : f32
    %67 = vector.broadcast %cst_37 : f32 to vector<8x8xf32>
    %68 = arith.mulf %66, %67 : vector<8x8xf32>
    %cst_38 = arith.constant dense<0xFF800000> : vector<8xf32>
    %69 = vector.multi_reduction <maximumf>, %68, %cst_38 [1] : vector<8x8xf32> to vector<8xf32>
    %70 = vector.shape_cast %69 : vector<8xf32> to vector<8x1xf32>
    %71 = vector.broadcast %70 : vector<8x1xf32> to vector<8x8xf32>
    %72 = arith.subf %68, %71 : vector<8x8xf32>
    %73 = math.exp %72 : vector<8x8xf32>
    %cst_39 = arith.constant dense<0.000000e+00> : vector<8xf32>
    %74 = vector.multi_reduction <add>, %73, %cst_39 [1] : vector<8x8xf32> to vector<8xf32>
    %75 = vector.shape_cast %74 : vector<8xf32> to vector<8x1xf32>
    %76 = tpu.reciprocal %75 : vector<8x1xf32> -> vector<8x1xf32>
    %77 = vector.broadcast %76 : vector<8x1xf32> to vector<8x8xf32>
    %78 = arith.mulf %73, %77 : vector<8x8xf32>
    %cst_40 = arith.constant dense<0.000000e+00> : vector<8x8xf32>
    %79 = tpu.matmul %78, %64, %cst_40 {dimension_numbers = #tpu.dot_dimension_numbers<[1], [0], [0], [1], [0, 0, 1, 1], [], []>} : vector<8x8xf32>, vector<8x8xf32>, vector<8x8xf32> -> vector<8x8xf32>
    %80 = vector.extract_strided_slice %2 {offsets = [8, 0], sizes = [8, 32], strides = [1, 1]} : vector<32x32xf32> to vector<8x32xf32>
    %cst_41 = arith.constant dense<0.000000e+00> : vector<8x32xf32>
    %81 = tpu.matmul %79, %80, %cst_41 {dimension_numbers = #tpu.dot_dimension_numbers<[1], [0], [0], [1], [0, 0, 1, 1], [], []>} : vector<8x8xf32>, vector<8x32xf32>, vector<8x32xf32> -> vector<8x32xf32>
    %82 = arith.addf %61, %81 : vector<8x32xf32>
    %83 = vector.extract_strided_slice %39 {offsets = [0, 16], sizes = [8, 8], strides = [1, 1]} : vector<8x96xf32> to vector<8x8xf32>
    %84 = vector.extract_strided_slice %39 {offsets = [0, 48], sizes = [8, 8], strides = [1, 1]} : vector<8x96xf32> to vector<8x8xf32>
    %85 = vector.extract_strided_slice %39 {offsets = [0, 80], sizes = [8, 8], strides = [1, 1]} : vector<8x96xf32> to vector<8x8xf32>
    %86 = tpu.transpose %84, [1, 0] : vector<8x8xf32> -> vector<8x8xf32>
    %cst_42 = arith.constant dense<0.000000e+00> : vector<8x8xf32>
    %87 = tpu.matmul %83, %86, %cst_42 {dimension_numbers = #tpu.dot_dimension_numbers<[1], [0], [0], [1], [0, 0, 1, 1], [], []>} : vector<8x8xf32>, vector<8x8xf32>, vector<8x8xf32> -> vector<8x8xf32>
    %cst_43 = arith.constant 0.353553385 : f32
    %88 = vector.broadcast %cst_43 : f32 to vector<8x8xf32>
    %89 = arith.mulf %87, %88 : vector<8x8xf32>
    %cst_44 = arith.constant dense<0xFF800000> : vector<8xf32>
    %90 = vector.multi_reduction <maximumf>, %89, %cst_44 [1] : vector<8x8xf32> to vector<8xf32>
    %91 = vector.shape_cast %90 : vector<8xf32> to vector<8x1xf32>
    %92 = vector.broadcast %91 : vector<8x1xf32> to vector<8x8xf32>
    %93 = arith.subf %89, %92 : vector<8x8xf32>
    %94 = math.exp %93 : vector<8x8xf32>
    %cst_45 = arith.constant dense<0.000000e+00> : vector<8xf32>
    %95 = vector.multi_reduction <add>, %94, %cst_45 [1] : vector<8x8xf32> to vector<8xf32>
    %96 = vector.shape_cast %95 : vector<8xf32> to vector<8x1xf32>
    %97 = tpu.reciprocal %96 : vector<8x1xf32> -> vector<8x1xf32>
    %98 = vector.broadcast %97 : vector<8x1xf32> to vector<8x8xf32>
    %99 = arith.mulf %94, %98 : vector<8x8xf32>
    %cst_46 = arith.constant dense<0.000000e+00> : vector<8x8xf32>
    %100 = tpu.matmul %99, %85, %cst_46 {dimension_numbers = #tpu.dot_dimension_numbers<[1], [0], [0], [1], [0, 0, 1, 1], [], []>} : vector<8x8xf32>, vector<8x8xf32>, vector<8x8xf32> -> vector<8x8xf32>
    %101 = vector.extract_strided_slice %2 {offsets = [16, 0], sizes = [8, 32], strides = [1, 1]} : vector<32x32xf32> to vector<8x32xf32>
    %cst_47 = arith.constant dense<0.000000e+00> : vector<8x32xf32>
    %102 = tpu.matmul %100, %101, %cst_47 {dimension_numbers = #tpu.dot_dimension_numbers<[1], [0], [0], [1], [0, 0, 1, 1], [], []>} : vector<8x8xf32>, vector<8x32xf32>, vector<8x32xf32> -> vector<8x32xf32>
    %103 = arith.addf %82, %102 : vector<8x32xf32>
    %104 = vector.extract_strided_slice %39 {offsets = [0, 24], sizes = [8, 8], strides = [1, 1]} : vector<8x96xf32> to vector<8x8xf32>
    %105 = vector.extract_strided_slice %39 {offsets = [0, 56], sizes = [8, 8], strides = [1, 1]} : vector<8x96xf32> to vector<8x8xf32>
    %106 = vector.extract_strided_slice %39 {offsets = [0, 88], sizes = [8, 8], strides = [1, 1]} : vector<8x96xf32> to vector<8x8xf32>
    %107 = tpu.transpose %105, [1, 0] : vector<8x8xf32> -> vector<8x8xf32>
    %cst_48 = arith.constant dense<0.000000e+00> : vector<8x8xf32>
    %108 = tpu.matmul %104, %107, %cst_48 {dimension_numbers = #tpu.dot_dimension_numbers<[1], [0], [0], [1], [0, 0, 1, 1], [], []>} : vector<8x8xf32>, vector<8x8xf32>, vector<8x8xf32> -> vector<8x8xf32>
    %cst_49 = arith.constant 0.353553385 : f32
    %109 = vector.broadcast %cst_49 : f32 to vector<8x8xf32>
    %110 = arith.mulf %108, %109 : vector<8x8xf32>
    %cst_50 = arith.constant dense<0xFF800000> : vector<8xf32>
    %111 = vector.multi_reduction <maximumf>, %110, %cst_50 [1] : vector<8x8xf32> to vector<8xf32>
    %112 = vector.shape_cast %111 : vector<8xf32> to vector<8x1xf32>
    %113 = vector.broadcast %112 : vector<8x1xf32> to vector<8x8xf32>
    %114 = arith.subf %110, %113 : vector<8x8xf32>
    %115 = math.exp %114 : vector<8x8xf32>
    %cst_51 = arith.constant dense<0.000000e+00> : vector<8xf32>
    %116 = vector.multi_reduction <add>, %115, %cst_51 [1] : vector<8x8xf32> to vector<8xf32>
    %117 = vector.shape_cast %116 : vector<8xf32> to vector<8x1xf32>
    %118 = tpu.reciprocal %117 : vector<8x1xf32> -> vector<8x1xf32>
    %119 = vector.broadcast %118 : vector<8x1xf32> to vector<8x8xf32>
    %120 = arith.mulf %115, %119 : vector<8x8xf32>
    %cst_52 = arith.constant dense<0.000000e+00> : vector<8x8xf32>
    %121 = tpu.matmul %120, %106, %cst_52 {dimension_numbers = #tpu.dot_dimension_numbers<[1], [0], [0], [1], [0, 0, 1, 1], [], []>} : vector<8x8xf32>, vector<8x8xf32>, vector<8x8xf32> -> vector<8x8xf32>
    %122 = vector.extract_strided_slice %2 {offsets = [24, 0], sizes = [8, 32], strides = [1, 1]} : vector<32x32xf32> to vector<8x32xf32>
    %cst_53 = arith.constant dense<0.000000e+00> : vector<8x32xf32>
    %123 = tpu.matmul %121, %122, %cst_53 {dimension_numbers = #tpu.dot_dimension_numbers<[1], [0], [0], [1], [0, 0, 1, 1], [], []>} : vector<8x8xf32>, vector<8x32xf32>, vector<8x32xf32> -> vector<8x32xf32>
    %124 = arith.addf %103, %123 : vector<8x32xf32>
    %125 = arith.addf %9, %124 : vector<8x32xf32>
    %126 = vector.broadcast %3 : vector<1x32xf32> to vector<8x32xf32>
    %127 = arith.addf %125, %126 : vector<8x32xf32>
    %cst_54 = arith.constant dense<0.000000e+00> : vector<32xf32>
    %128 = vector.multi_reduction <add>, %127, %cst_54 [0] : vector<8x32xf32> to vector<32xf32>
    %129 = vector.shape_cast %128 : vector<32xf32> to vector<1x32xf32>
    %cst_55 = arith.constant 8.000000e+00 : f32
    %130 = vector.broadcast %cst_55 : f32 to vector<1x32xf32>
    %131 = arith.divf %129, %130 : vector<1x32xf32>
    %132 = vector.broadcast %131 : vector<1x32xf32> to vector<8x32xf32>
    %133 = arith.subf %127, %132 : vector<8x32xf32>
    %134 = arith.mulf %133, %133 : vector<8x32xf32>
    %cst_56 = arith.constant dense<0.000000e+00> : vector<32xf32>
    %135 = vector.multi_reduction <add>, %134, %cst_56 [0] : vector<8x32xf32> to vector<32xf32>
    %136 = vector.shape_cast %135 : vector<32xf32> to vector<1x32xf32>
    %cst_57 = arith.constant 8.000000e+00 : f32
    %137 = vector.broadcast %cst_57 : f32 to vector<1x32xf32>
    %138 = arith.divf %136, %137 : vector<1x32xf32>
    %139 = math.sqrt %138 : vector<1x32xf32>
    %cst_58 = arith.constant 9.99999974E-6 : f32
    %140 = vector.broadcast %cst_58 : f32 to vector<1x32xf32>
    %141 = arith.addf %139, %140 : vector<1x32xf32>
    %142 = tpu.reciprocal %141 : vector<1x32xf32> -> vector<1x32xf32>
    %143 = vector.broadcast %131 : vector<1x32xf32> to vector<8x32xf32>
    %144 = arith.subf %127, %143 : vector<8x32xf32>
    %145 = vector.broadcast %142 : vector<1x32xf32> to vector<8x32xf32>
    %146 = arith.mulf %144, %145 : vector<8x32xf32>
    %147 = vector.broadcast %13 : vector<1x32xf32> to vector<8x32xf32>
    %148 = arith.mulf %147, %146 : vector<8x32xf32>
    %149 = vector.broadcast %11 : vector<1x32xf32> to vector<8x32xf32>
    %150 = arith.addf %148, %149 : vector<8x32xf32>
    %cst_59 = arith.constant dense<0.000000e+00> : vector<8x64xf32>
    %151 = tpu.matmul %150, %4, %cst_59 {dimension_numbers = #tpu.dot_dimension_numbers<[1], [0], [0], [1], [0, 0, 1, 1], [], []>} : vector<8x32xf32>, vector<32x64xf32>, vector<8x64xf32> -> vector<8x64xf32>
    %152 = vector.broadcast %5 : vector<1x64xf32> to vector<8x64xf32>
    %153 = arith.addf %151, %152 : vector<8x64xf32>
    %cst_60 = arith.constant 0.000000e+00 : f32
    %154 = vector.broadcast %cst_60 : f32 to vector<8x64xf32>
    %155 = arith.maximumf %153, %154 : vector<8x64xf32>
    %cst_61 = arith.constant dense<0.000000e+00> : vector<8x32xf32>
    %156 = tpu.matmul %155, %6, %cst_61 {dimension_numbers = #tpu.dot_dimension_numbers<[1], [0], [0], [1], [0, 0, 1, 1], [], []>} : vector<8x64xf32>, vector<64x32xf32>, vector<8x32xf32> -> vector<8x32xf32>
    %157 = vector.broadcast %7 : vector<1x32xf32> to vector<8x32xf32>
    %158 = arith.addf %156, %157 : vector<8x32xf32>
    %159 = arith.addf %127, %158 : vector<8x32xf32>
    %c0_62 = arith.constant 0 : index
    %c0_63 = arith.constant 0 : index
    %c0_64 = arith.constant 0 : index
    %160 = vector.load %arg12[%c0_62, %c0_63, %c0_64] : memref<1x8x32xf32, #tpu.memory_space<vmem>>, vector<1x8x32xf32>
    %161 = vector.shape_cast %160 : vector<1x8x32xf32> to vector<8x32xf32>
    %162 = vector.shape_cast %159 : vector<8x32xf32> to vector<1x8x32xf32>
    tpu.vector_store %arg12[%c0_62, %c0_63, %c0_64], %162 {strides = array<i32>} : memref<1x8x32xf32, #tpu.memory_space<vmem>>, vector<1x8x32xf32>,
    return
  }
  func.func @transform_0(%arg0: i32) -> (i32, i32, i32) {
    %c0_i32 = arith.constant 0 : i32
    %c0_i32_0 = arith.constant 0 : i32
    %c0_i32_1 = arith.constant 0 : i32
    return %arg0, %c0_i32, %c0_i32_0 : i32, i32, i32
  }
  func.func @transform_1(%arg0: i32) -> (i32, i32, i32) {
    %c0_i32 = arith.constant 0 : i32
    %c0_i32_0 = arith.constant 0 : i32
    %c0_i32_1 = arith.constant 0 : i32
    return %arg0, %c0_i32, %c0_i32_0 : i32, i32, i32
  }
  func.func @transform_2(%arg0: i32) -> (i32, i32, i32) {
    %c0_i32 = arith.constant 0 : i32
    %c0_i32_0 = arith.constant 0 : i32
    %c0_i32_1 = arith.constant 0 : i32
    return %arg0, %c0_i32, %c0_i32_0 : i32, i32, i32
  }
  func.func @transform_3(%arg0: i32) -> (i32, i32) {
    %c0_i32 = arith.constant 0 : i32
    %c0_i32_0 = arith.constant 0 : i32
    %c0_i32_1 = arith.constant 0 : i32
    return %c0_i32, %c0_i32_0 : i32, i32
  }
  func.func @transform_4(%arg0: i32) -> (i32, i32) {
    %c0_i32 = arith.constant 0 : i32
    %c0_i32_0 = arith.constant 0 : i32
    %c0_i32_1 = arith.constant 0 : i32
    return %c0_i32, %c0_i32_0 : i32, i32
  }
  func.func @transform_5(%arg0: i32) -> (i32, i32) {
    %c0_i32 = arith.constant 0 : i32
    %c0_i32_0 = arith.constant 0 : i32
    %c0_i32_1 = arith.constant 0 : i32
    return %c0_i32, %c0_i32_0 : i32, i32
  }
  func.func @transform_6(%arg0: i32) -> (i32, i32) {
    %c0_i32 = arith.constant 0 : i32
    %c0_i32_0 = arith.constant 0 : i32
    %c0_i32_1 = arith.constant 0 : i32
    return %c0_i32, %c0_i32_0 : i32, i32
  }
  func.func @transform_7(%arg0: i32) -> (i32, i32) {
    %c0_i32 = arith.constant 0 : i32
    %c0_i32_0 = arith.constant 0 : i32
    %c0_i32_1 = arith.constant 0 : i32
    return %c0_i32, %c0_i32_0 : i32, i32
  }
  func.func @transform_8(%arg0: i32) -> (i32, i32) {
    %c0_i32 = arith.constant 0 : i32
    %c0_i32_0 = arith.constant 0 : i32
    %c0_i32_1 = arith.constant 0 : i32
    return %c0_i32, %c0_i32_0 : i32, i32
  }
  func.func @transform_9(%arg0: i32) -> (i32, i32) {
    %c0_i32 = arith.constant 0 : i32
    %c0_i32_0 = arith.constant 0 : i32
    %c0_i32_1 = arith.constant 0 : i32
    return %c0_i32, %c0_i32_0 : i32, i32
  }
  func.func @transform_10(%arg0: i32) -> (i32, i32) {
    %c0_i32 = arith.constant 0 : i32
    %c0_i32_0 = arith.constant 0 : i32
    %c0_i32_1 = arith.constant 0 : i32
    return %c0_i32, %c0_i32_0 : i32, i32
  }
  func.func @transform_11(%arg0: i32) -> (i32, i32, i32) {
    %c0_i32 = arith.constant 0 : i32
    %c0_i32_0 = arith.constant 0 : i32
    %c0_i32_1 = arith.constant 0 : i32
    return %arg0, %c0_i32, %c0_i32_0 : i32, i32, i32
  }
}

</mosaic_0001>

<llo_original>
// kernel: tpu_custom_call.1
$region0: #{tpu_custom_call.1}
  #allocation0 [shape = 'u32[]', space=smem, size = 0x4, offset = 0x4, fixed_abs, tag = 'smem constant byte address 0x4 - core index']
  #allocation1 [shape = 'u32[72,128]{1,0:T(1,128)}', space=vmem, size = 0x9000, scoped, tag = 'internal scratch']
  %s0 = inlined_call_operand.hbm [shape: f32[2,8,32], index: 0, kind: input, shape index: {}]
  %s1 = inlined_call_operand.hbm [shape: f32[2,1,32], index: 1, kind: input, shape index: {}]
  %s2 = inlined_call_operand.hbm [shape: f32[2,1,32], index: 2, kind: input, shape index: {}]
  %s3 = inlined_call_operand.vmem [shape: f32[32,96], index: 3, kind: input, shape index: {}]
  %s4 = inlined_call_operand.vmem [shape: f32[1,96], index: 4, kind: input, shape index: {}]
  %s5 = inlined_call_operand.vmem [shape: f32[32,32], index: 5, kind: input, shape index: {}]
  %s6 = inlined_call_operand.vmem [shape: f32[1,32], index: 6, kind: input, shape index: {}]
  %s7 = inlined_call_operand.vmem [shape: f32[32,64], index: 7, kind: input, shape index: {}]
  %s8 = inlined_call_operand.vmem [shape: f32[1,64], index: 8, kind: input, shape index: {}]
  %s9 = inlined_call_operand.vmem [shape: f32[64,32], index: 9, kind: input, shape index: {}]
  %s10 = inlined_call_operand.vmem [shape: f32[1,32], index: 10, kind: input, shape index: {}]
  %s11 = inlined_call_operand.hbm [shape: f32[2,8,32], index: 11, kind: output, shape index: {}]
  %s12 = sld [smem:[#allocation0]]
  $region89: #{tpu_custom_call.1} parent=0
    _
  %s14 = ssub.s32 1, %s12
  %s15 = scalar_select 0, %s14, %s12
  $region1: #{tpu_custom_call.1} parent=0
    #allocation2 [shape = 'u8[8192]{0}', space=vmem, size = 0x2000, scoped, tag = 'input window, operand 0']
    #allocation3 [shape = 's32[2]{0}', space=sflag, size = 0x8, scoped, tag = 'scoped memory for tpu_custom_call.1']
    #allocation4 [shape = 's32[2]{0}', space=sflag, size = 0x8, scoped, tag = 'scoped memory for tpu_custom_call.1']
    #allocation5 [shape = 'u8[1024]{0}', space=vmem, size = 0x400, scoped, tag = 'input window, operand 1']
    #allocation6 [shape = 's32[2]{0}', space=sflag, size = 0x8, scoped, tag = 'scoped memory for tpu_custom_call.1']
    #allocation7 [shape = 'u8[1024]{0}', space=vmem, size = 0x400, scoped, tag = 'input window, operand 2']
    #allocation8 [shape = 'u8[8192]{0}', space=vmem, size = 0x2000, scoped, tag = 'output window, operand 0']
    %16 = vsyncpa [#allocation3], 0
    %s17 = scalar_lea.sflag [#allocation3], 1
    %18 = vsyncpa %s17, 0
    %19 = vsyncpa [#allocation6], 0
    %s20 = scalar_lea.sflag [#allocation6], 1
    %21 = vsyncpa %s20, 0
    %22 = vsyncpa [#allocation4], 0
    %s23 = scalar_lea.sflag [#allocation4], 1
    %24 = vsyncpa %s23, 0
    loop: start=0, step=1, limit=4
    $region2: #{tpu_custom_call.1} parent=1 // loop_pre_header
      _
    $region3: #{tpu_custom_call.1} parent=1 // loop_header
      %s26 = sphi 0, %s30
      %p27 = scmp.ge.s32.totalorder %s26, 4
      %s36 = sphi 0, %s38
      %s39 = sphi 0, %s36
      %s40 = sphi 0, %s39
      %s56 = sphi 0, %s40
      %s62 = sphi 0, %s64
      %s65 = sphi 0, %s62
      %s66 = sphi 0, %s65
      %s82 = sphi 0, %s66
      %s88 = sphi 0, %s90
      %s91 = sphi 0, %s88
      %s92 = sphi 0, %s91
      %s108 = sphi 0, %s92
      %s112 = sphi 0, %s112
      %s114 = sphi 0, %s112
      %s115 = sphi 0, %s114
      %s129 = sphi 0, %s115
      %s133 = sphi 0, %s133
      %s135 = sphi 0, %s133
      %s136 = sphi 0, %s135
      %s150 = sphi 0, %s136
      %s154 = sphi 0, %s154
      %s156 = sphi 0, %s154
      %s157 = sphi 0, %s156
      %s171 = sphi 0, %s157
      %s175 = sphi 0, %s175
      %s177 = sphi 0, %s175
      %s178 = sphi 0, %s177
      %s192 = sphi 0, %s178
      %s196 = sphi 0, %s196
      %s198 = sphi 0, %s196
      %s199 = sphi 0, %s198
      %s213 = sphi 0, %s199
      %s217 = sphi 0, %s217
      %s219 = sphi 0, %s217
      %s220 = sphi 0, %s219
      %s234 = sphi 0, %s220
      %s238 = sphi 0, %s238
      %s240 = sphi 0, %s238
      %s241 = sphi 0, %s240
      %s255 = sphi 0, %s241
      %s259 = sphi 0, %s259
      %s261 = sphi 0, %s259
      %s262 = sphi 0, %s261
      %s276 = sphi 0, %s262
      %s282 = sphi 0, %s284
      %s285 = sphi 0, %s282
      %s286 = sphi 0, %s285
      %s302 = sphi 0, %s286
    $region4: #{tpu_custom_call.1} parent=1 // loop_header_branch
      %29 = sbr.rel (%p27) target = $region8
    $region5: #{tpu_custom_call.1} parent=1 // loop_body
      %s31 = ssub.s32 %s26, 1
      %s32 = ssub.s32 %s26, 2
      %s33 = sadd.s32 %s26, 1
      %s34 = ssub.s32 %s26, %s33
      %p35 = scmp.eq.s32.totalorder %s34, 0
      %s37 = sadd.s32 %s36, 1
      %s38 = scalar_select %p35, %s36, %s37
      %p41 = pneg %p35
      %p42 = scmp.eq.s32.totalorder %s26, 1
      %p43 = por %p41, %p42
      %p44 = scmp.ne.s32.totalorder %s36, %s39
      %p45 = scmp.eq.s32.totalorder %s26, 0
      %p46 = por %p44, %p45
      %p47 = scmp.ne.s32.totalorder %s36, %s39
      %p48 = scmp.eq.s32.totalorder %s31, 1
      %p49 = por %p47, %p48
      %p50 = scmp.ne.s32.totalorder %s39, %s40
      %p51 = scmp.eq.s32.totalorder %s31, 0
      %p52 = por %p50, %p51
      %p53 = scmp.ne.s32.totalorder %s39, %s40
      %p54 = scmp.eq.s32.totalorder %s32, 1
      %p55 = por %p53, %p54
      %p57 = scmp.ne.s32.totalorder %s40, %s56
      %p58 = scmp.eq.s32.totalorder %s32, 0
      %p59 = por %p57, %p58
      %s60 = ssub.s32 %s26, %s33
      %p61 = scmp.eq.s32.totalorder %s60, 0
      %s63 = sadd.s32 %s62, 1
      %s64 = scalar_select %p61, %s62, %s63
      %p67 = pneg %p61
      %p68 = scmp.eq.s32.totalorder %s26, 1
      %p69 = por %p67, %p68
      %p70 = scmp.ne.s32.totalorder %s62, %s65
      %p71 = scmp.eq.s32.totalorder %s26, 0
      %p72 = por %p70, %p71
      %p73 = scmp.ne.s32.totalorder %s62, %s65
      %p74 = scmp.eq.s32.totalorder %s31, 1
      %p75 = por %p73, %p74
      %p76 = scmp.ne.s32.totalorder %s65, %s66
      %p77 = scmp.eq.s32.totalorder %s31, 0
      %p78 = por %p76, %p77
      %p79 = scmp.ne.s32.totalorder %s65, %s66
      %p80 = scmp.eq.s32.totalorder %s32, 1
      %p81 = por %p79, %p80
      %p83 = scmp.ne.s32.totalorder %s66, %s82
      %p84 = scmp.eq.s32.totalorder %s32, 0
      %p85 = por %p83, %p84
      %s86 = ssub.s32 %s26, %s33
      %p87 = scmp.eq.s32.totalorder %s86, 0
      %s89 = sadd.s32 %s88, 1
      %s90 = scalar_select %p87, %s88, %s89
      %p93 = pneg %p87
      %p94 = scmp.eq.s32.totalorder %s26, 1
      %p95 = por %p93, %p94
      %p96 = scmp.ne.s32.totalorder %s88, %s91
      %p97 = scmp.eq.s32.totalorder %s26, 0
      %p98 = por %p96, %p97
      %p99 = scmp.ne.s32.totalorder %s88, %s91
      %p100 = scmp.eq.s32.totalorder %s31, 1
      %p101 = por %p99, %p100
      %p102 = scmp.ne.s32.totalorder %s91, %s92
      %p103 = scmp.eq.s32.totalorder %s31, 0
      %p104 = por %p102, %p103
      %p105 = scmp.ne.s32.totalorder %s91, %s92
      %p106 = scmp.eq.s32.totalorder %s32, 1
      %p107 = por %p105, %p106
      %p109 = scmp.ne.s32.totalorder %s92, %s108
      %p110 = scmp.eq.s32.totalorder %s32, 0
      %p111 = por %p109, %p110
      %s113 = sadd.s32 %s112, 1
      %p116 = scmp.eq.s32.totalorder %s26, 1
      %p117 = scmp.ne.s32.totalorder %s112, %s114
      %p118 = scmp.eq.s32.totalorder %s26, 0
      %p119 = por %p117, %p118
      %p120 = scmp.ne.s32.totalorder %s112, %s114
      %p121 = scmp.eq.s32.totalorder %s31, 1
      %p122 = por %p120, %p121
      %p123 = scmp.ne.s32.totalorder %s114, %s115
      %p124 = scmp.eq.s32.totalorder %s31, 0
      %p125 = por %p123, %p124
      %p126 = scmp.ne.s32.totalorder %s114, %s115
      %p127 = scmp.eq.s32.totalorder %s32, 1
      %p128 = por %p126, %p127
      %p130 = scmp.ne.s32.totalorder %s115, %s129
      %p131 = scmp.eq.s32.totalorder %s32, 0
      %p132 = por %p130, %p131
      %s134 = sadd.s32 %s133, 1
      %p137 = scmp.eq.s32.totalorder %s26, 1
      %p138 = scmp.ne.s32.totalorder %s133, %s135
      %p139 = scmp.eq.s32.totalorder %s26, 0
      %p140 = por %p138, %p139
      %p141 = scmp.ne.s32.totalorder %s133, %s135
      %p142 = scmp.eq.s32.totalorder %s31, 1
      %p143 = por %p141, %p142
      %p144 = scmp.ne.s32.totalorder %s135, %s136
      %p145 = scmp.eq.s32.totalorder %s31, 0
      %p146 = por %p144, %p145
      %p147 = scmp.ne.s32.totalorder %s135, %s136
      %p148 = scmp.eq.s32.totalorder %s32, 1
      %p149 = por %p147, %p148
      %p151 = scmp.ne.s32.totalorder %s136, %s150
      %p152 = scmp.eq.s32.totalorder %s32, 0
      %p153 = por %p151, %p152
      %s155 = sadd.s32 %s154, 1
      %p158 = scmp.eq.s32.totalorder %s26, 1
      %p159 = scmp.ne.s32.totalorder %s154, %s156
      %p160 = scmp.eq.s32.totalorder %s26, 0
      %p161 = por %p159, %p160
      %p162 = scmp.ne.s32.totalorder %s154, %s156
      %p163 = scmp.eq.s32.totalorder %s31, 1
      %p164 = por %p162, %p163
      %p165 = scmp.ne.s32.totalorder %s156, %s157
      %p166 = scmp.eq.s32.totalorder %s31, 0
      %p167 = por %p165, %p166
      %p168 = scmp.ne.s32.totalorder %s156, %s157
      %p169 = scmp.eq.s32.totalorder %s32, 1
      %p170 = por %p168, %p169
      %p172 = scmp.ne.s32.totalorder %s157, %s171
      %p173 = scmp.eq.s32.totalorder %s32, 0
      %p174 = por %p172, %p173
      %s176 = sadd.s32 %s175, 1
      %p179 = scmp.eq.s32.totalorder %s26, 1
      %p180 = scmp.ne.s32.totalorder %s175, %s177
      %p181 = scmp.eq.s32.totalorder %s26, 0
      %p182 = por %p180, %p181
      %p183 = scmp.ne.s32.totalorder %s175, %s177
      %p184 = scmp.eq.s32.totalorder %s31, 1
      %p185 = por %p183, %p184
      %p186 = scmp.ne.s32.totalorder %s177, %s178
      %p187 = scmp.eq.s32.totalorder %s31, 0
      %p188 = por %p186, %p187
      %p189 = scmp.ne.s32.totalorder %s177, %s178
      %p190 = scmp.eq.s32.totalorder %s32, 1
      %p191 = por %p189, %p190
      %p193 = scmp.ne.s32.totalorder %s178, %s192
      %p194 = scmp.eq.s32.totalorder %s32, 0
      %p195 = por %p193, %p194
      %s197 = sadd.s32 %s196, 1
      %p200 = scmp.eq.s32.totalorder %s26, 1
      %p201 = scmp.ne.s32.totalorder %s196, %s198
      %p202 = scmp.eq.s32.totalorder %s26, 0
      %p203 = por %p201, %p202
      %p204 = scmp.ne.s32.totalorder %s196, %s198
      %p205 = scmp.eq.s32.totalorder %s31, 1
      %p206 = por %p204, %p205
      %p207 = scmp.ne.s32.totalorder %s198, %s199
      %p208 = scmp.eq.s32.totalorder %s31, 0
      %p209 = por %p207, %p208
      %p210 = scmp.ne.s32.totalorder %s198, %s199
      %p211 = scmp.eq.s32.totalorder %s32, 1
      %p212 = por %p210, %p211
      %p214 = scmp.ne.s32.totalorder %s199, %s213
      %p215 = scmp.eq.s32.totalorder %s32, 0
      %p216 = por %p214, %p215
      %s218 = sadd.s32 %s217, 1
      %p221 = scmp.eq.s32.totalorder %s26, 1
      %p222 = scmp.ne.s32.totalorder %s217, %s219
      %p223 = scmp.eq.s32.totalorder %s26, 0
      %p224 = por %p222, %p223
      %p225 = scmp.ne.s32.totalorder %s217, %s219
      %p226 = scmp.eq.s32.totalorder %s31, 1
      %p227 = por %p225, %p226
      %p228 = scmp.ne.s32.totalorder %s219, %s220
      %p229 = scmp.eq.s32.totalorder %s31, 0
      %p230 = por %p228, %p229
      %p231 = scmp.ne.s32.totalorder %s219, %s220
      %p232 = scmp.eq.s32.totalorder %s32, 1
      %p233 = por %p231, %p232
      %p235 = scmp.ne.s32.totalorder %s220, %s234
      %p236 = scmp.eq.s32.totalorder %s32, 0
      %p237 = por %p235, %p236
      %s239 = sadd.s32 %s238, 1
      %p242 = scmp.eq.s32.totalorder %s26, 1
      %p243 = scmp.ne.s32.totalorder %s238, %s240
      %p244 = scmp.eq.s32.totalorder %s26, 0
      %p245 = por %p243, %p244
      %p246 = scmp.ne.s32.totalorder %s238, %s240
      %p247 = scmp.eq.s32.totalorder %s31, 1
      %p248 = por %p246, %p247
      %p249 = scmp.ne.s32.totalorder %s240, %s241
      %p250 = scmp.eq.s32.totalorder %s31, 0
      %p251 = por %p249, %p250
      %p252 = scmp.ne.s32.totalorder %s240, %s241
      %p253 = scmp.eq.s32.totalorder %s32, 1
      %p254 = por %p252, %p253
      %p256 = scmp.ne.s32.totalorder %s241, %s255
      %p257 = scmp.eq.s32.totalorder %s32, 0
      %p258 = por %p256, %p257
      %s260 = sadd.s32 %s259, 1
      %p263 = scmp.eq.s32.totalorder %s26, 1
      %p264 = scmp.ne.s32.totalorder %s259, %s261
      %p265 = scmp.eq.s32.totalorder %s26, 0
      %p266 = por %p264, %p265
      %p267 = scmp.ne.s32.totalorder %s259, %s261
      %p268 = scmp.eq.s32.totalorder %s31, 1
      %p269 = por %p267, %p268
      %p270 = scmp.ne.s32.totalorder %s261, %s262
      %p271 = scmp.eq.s32.totalorder %s31, 0
      %p272 = por %p270, %p271
      %p273 = scmp.ne.s32.totalorder %s261, %s262
      %p274 = scmp.eq.s32.totalorder %s32, 1
      %p275 = por %p273, %p274
      %p277 = scmp.ne.s32.totalorder %s262, %s276
      %p278 = scmp.eq.s32.totalorder %s32, 0
      %p279 = por %p277, %p278
      %s280 = ssub.s32 %s26, %s33
      %p281 = scmp.eq.s32.totalorder %s280, 0
      %s283 = sadd.s32 %s282, 1
      %s284 = scalar_select %p281, %s282, %s283
      %p287 = pneg %p281
      %p288 = scmp.eq.s32.totalorder %s26, 1
      %p289 = por %p287, %p288
      %p290 = scmp.ne.s32.totalorder %s282, %s285
      %p291 = scmp.eq.s32.totalorder %s26, 0
      %p292 = por %p290, %p291
      %p293 = scmp.ne.s32.totalorder %s282, %s285
      %p294 = scmp.eq.s32.totalorder %s31, 1
      %p295 = por %p293, %p294
      %p296 = scmp.ne.s32.totalorder %s285, %s286
      %p297 = scmp.eq.s32.totalorder %s31, 0
      %p298 = por %p296, %p297
      %p299 = scmp.ne.s32.totalorder %s285, %s286
      %p300 = scmp.eq.s32.totalorder %s32, 1
      %p301 = por %p299, %p300
      %p303 = scmp.ne.s32.totalorder %s286, %s302
      %p304 = scmp.eq.s32.totalorder %s32, 0
      %p305 = por %p303, %p304
      %p306 = scmp.le.s32.totalorder 1, %s26
      %p307 = scmp.lt.s32.totalorder %s26, 3
      %p308 = pnand %p306, %p307
      %p309 = pneg %p308
      // Predicated region
      $region9: #{tpu_custom_call.1} parent=5 // pred_check
        _
      $region10: #{tpu_custom_call.1} parent=5 // pred_check_branch
        %311 = sbr.rel (%p308) target = $region12
      $region11: #{tpu_custom_call.1} parent=5 // pred_region
        %s312 = ssub.s32 %s26, 1
        // Predicated region
        $region13: #{tpu_custom_call.1} parent=11 // pred_check
          %p313 = pneg %p125
        $region14: #{tpu_custom_call.1} parent=11 // pred_check_branch
          %315 = sbr.rel (%p313) target = $region16
        $region15: #{tpu_custom_call.1} parent=11 // pred_region
          _
        $region16: #{tpu_custom_call.1} parent=11 // pred_fallthru
          _
        // Predicated region
        $region17: #{tpu_custom_call.1} parent=11 // pred_check
          %p316 = pneg %p146
        $region18: #{tpu_custom_call.1} parent=11 // pred_check_branch
          %318 = sbr.rel (%p316) target = $region20
        $region19: #{tpu_custom_call.1} parent=11 // pred_region
          _
        $region20: #{tpu_custom_call.1} parent=11 // pred_fallthru
          _
        // Predicated region
        $region21: #{tpu_custom_call.1} parent=11 // pred_check
          %p319 = pneg %p167
        $region22: #{tpu_custom_call.1} parent=11 // pred_check_branch
          %321 = sbr.rel (%p319) target = $region24
        $region23: #{tpu_custom_call.1} parent=11 // pred_region
          _
        $region24: #{tpu_custom_call.1} parent=11 // pred_fallthru
          _
        // Predicated region
        $region25: #{tpu_custom_call.1} parent=11 // pred_check
          %p322 = pneg %p188
        $region26: #{tpu_custom_call.1} parent=11 // pred_check_branch
          %324 = sbr.rel (%p322) target = $region28
        $region27: #{tpu_custom_call.1} parent=11 // pred_region
          _
        $region28: #{tpu_custom_call.1} parent=11 // pred_fallthru
          _
        // Predicated region
        $region29: #{tpu_custom_call.1} parent=11 // pred_check
          %p325 = pneg %p209
        $region30: #{tpu_custom_call.1} parent=11 // pred_check_branch
          %327 = sbr.rel (%p325) target = $region32
        $region31: #{tpu_custom_call.1} parent=11 // pred_region
          _
        $region32: #{tpu_custom_call.1} parent=11 // pred_fallthru
          _
        // Predicated region
        $region33: #{tpu_custom_call.1} parent=11 // pred_check
          %p328 = pneg %p230
        $region34: #{tpu_custom_call.1} parent=11 // pred_check_branch
          %330 = sbr.rel (%p328) target = $region36
        $region35: #{tpu_custom_call.1} parent=11 // pred_region
          _
        $region36: #{tpu_custom_call.1} parent=11 // pred_fallthru
          _
        // Predicated region
        $region37: #{tpu_custom_call.1} parent=11 // pred_check
          %p331 = pneg %p251
        $region38: #{tpu_custom_call.1} parent=11 // pred_check_branch
          %333 = sbr.rel (%p331) target = $region40
        $region39: #{tpu_custom_call.1} parent=11 // pred_region
          _
        $region40: #{tpu_custom_call.1} parent=11 // pred_fallthru
          _
        // Predicated region
        $region41: #{tpu_custom_call.1} parent=11 // pred_check
          %p334 = pneg %p272
        $region42: #{tpu_custom_call.1} parent=11 // pred_check_branch
          %336 = sbr.rel (%p334) target = $region44
        $region43: #{tpu_custom_call.1} parent=11 // pred_region
          _
        $region44: #{tpu_custom_call.1} parent=11 // pred_fallthru
          _
      $region12: #{tpu_custom_call.1} parent=5 // pred_fallthru
        _
      %p337 = scmp.lt.s32.totalorder %s26, 2
      // Predicated region
      $region45: #{tpu_custom_call.1} parent=5 // pred_check
        %p338 = pneg %p337
      $region46: #{tpu_custom_call.1} parent=5 // pred_check_branch
        %340 = sbr.rel (%p338) target = $region48
      $region47: #{tpu_custom_call.1} parent=5 // pred_region
        // Predicated region
        $region49: #{tpu_custom_call.1} parent=47 // pred_check
          %p341 = pneg %p46
        $region50: #{tpu_custom_call.1} parent=47 // pred_check_branch
          %343 = sbr.rel (%p341) target = $region52
        $region51: #{tpu_custom_call.1} parent=47 // pred_region
          %s344 = sand.u32 %s36, 1
          %s345 = scalar_lea.sflag [#allocation3], %s344
          %s346 = sand.u32 %s36, 1
          %s347 = smul.addr %s346, 8
          %s348 = scalar_lea.vmem [#allocation2], %s347
          %350 = vsyncadd %s345, 0
          %s351 = smul.addr %s26, 8
          %s352 = scalar_lea.hbm %s0, %s351
          %s354 = sshll.u32 %s352, 4
          %s355 = int_to_ptr.hbm [resolvable:$true] %s354
          %s356 = sshll.u32 %s348, 4
          %s357 = int_to_ptr.vmem [resolvable:$true] %s356
          %359 = dma.hbm_to_vmem [thread:$0]  %s355, 128, %s357, %s345
        $region52: #{tpu_custom_call.1} parent=47 // pred_fallthru
          _
        // Predicated region
        $region53: #{tpu_custom_call.1} parent=47 // pred_check
          %p360 = pneg %p72
        $region54: #{tpu_custom_call.1} parent=47 // pred_check_branch
          %362 = sbr.rel (%p360) target = $region56
        $region55: #{tpu_custom_call.1} parent=47 // pred_region
          %s363 = sand.u32 %s26, 1
          %s364 = scalar_lea.sflag [#allocation6], %s363
          %s365 = sand.u32 %s62, 1
          %s366 = scalar_lea.vmem [#allocation5], %s365
          %368 = vsyncadd %s364, 0
          %s369 = scalar_lea.hbm %s1, %s26
          %s371 = sshll.u32 %s369, 4
          %s372 = int_to_ptr.hbm [resolvable:$true] %s371
          %s373 = sshll.u32 %s366, 4
          %s374 = int_to_ptr.vmem [resolvable:$true] %s373
          %376 = dma.hbm_to_vmem [thread:$0]  %s372, 16, %s374, %s364
        $region56: #{tpu_custom_call.1} parent=47 // pred_fallthru
          _
        // Predicated region
        $region57: #{tpu_custom_call.1} parent=47 // pred_check
          %p377 = pneg %p98
        $region58: #{tpu_custom_call.1} parent=47 // pred_check_branch
          %379 = sbr.rel (%p377) target = $region60
        $region59: #{tpu_custom_call.1} parent=47 // pred_region
          %s380 = sand.u32 %s26, 1
          %s381 = scalar_lea.sflag [#allocation6], %s380
          %s382 = sand.u32 %s88, 1
          %s383 = scalar_lea.vmem [#allocation7], %s382
          %385 = vsyncadd %s381, 0
          %s386 = scalar_lea.hbm %s2, %s26
          %s388 = sshll.u32 %s386, 4
          %s389 = int_to_ptr.hbm [resolvable:$true] %s388
          %s390 = sshll.u32 %s383, 4
          %s391 = int_to_ptr.vmem [resolvable:$true] %s390
          %393 = dma.hbm_to_vmem [thread:$0]  %s389, 16, %s391, %s381
        $region60: #{tpu_custom_call.1} parent=47 // pred_fallthru
          _
      $region48: #{tpu_custom_call.1} parent=5 // pred_fallthru
        _
      %p394 = scmp.le.s32.totalorder 1, %s26
      %p395 = scmp.lt.s32.totalorder %s26, 3
      %p396 = pnand %p394, %p395
      %p397 = pneg %p396
      // Predicated region
      $region61: #{tpu_custom_call.1} parent=5 // pred_check
        _
      $region62: #{tpu_custom_call.1} parent=5 // pred_check_branch
        %399 = sbr.rel (%p396) target = $region64
      $region63: #{tpu_custom_call.1} parent=5 // pred_region
        %s400 = ssub.s32 %s26, 1
        %s401 = sand.u32 %s39, 1
        %s402 = scalar_lea.sflag [#allocation3], %s401
        %s403 = sand.u32 %s39, 1
        %s404 = smul.addr %s403, 8
        %s405 = scalar_lea.vmem [#allocation2], %s404
        // Predicated region
        $region65: #{tpu_custom_call.1} parent=63 // pred_check
          %p406 = pneg %p52
        $region66: #{tpu_custom_call.1} parent=63 // pred_check_branch
          %408 = sbr.rel (%p406) target = $region68
        $region67: #{tpu_custom_call.1} parent=63 // pred_region
          %410 = dma.done %s402, 128
        $region68: #{tpu_custom_call.1} parent=63 // pred_fallthru
          _
        %s411 = sand.u32 %s31, 1
        %s412 = scalar_lea.sflag [#allocation6], %s411
        %s413 = sand.u32 %s65, 1
        %s414 = scalar_lea.vmem [#allocation5], %s413
        // Predicated region
        $region69: #{tpu_custom_call.1} parent=63 // pred_check
          %p415 = pneg %p78
        $region70: #{tpu_custom_call.1} parent=63 // pred_check_branch
          %417 = sbr.rel (%p415) target = $region72
        $region71: #{tpu_custom_call.1} parent=63 // pred_region
          %419 = dma.done %s412, 16
        $region72: #{tpu_custom_call.1} parent=63 // pred_fallthru
          _
        %s420 = sand.u32 %s31, 1
        %s421 = scalar_lea.sflag [#allocation6], %s420
        %s422 = sand.u32 %s91, 1
        %s423 = scalar_lea.vmem [#allocation7], %s422
        // Predicated region
        $region73: #{tpu_custom_call.1} parent=63 // pred_check
          %p424 = pneg %p104
        $region74: #{tpu_custom_call.1} parent=63 // pred_check_branch
          %426 = sbr.rel (%p424) target = $region76
        $region75: #{tpu_custom_call.1} parent=63 // pred_region
          %428 = dma.done %s421, 16
        $region76: #{tpu_custom_call.1} parent=63 // pred_fallthru
          _
        %s429 = sand.u32 %s39, 1
        %s430 = scalar_lea.sflag [#allocation3], %s429
        %s431 = sand.u32 %s39, 1
        %s432 = smul.addr %s431, 8
        %s433 = scalar_lea.vmem [#allocation2], %s432
        %p434 = pneg %p52
        %p435 = pneg %p49
        %s436 = sand.u32 %s31, 1
        %s437 = scalar_lea.sflag [#allocation6], %s436
        %s438 = sand.u32 %s65, 1
        %s439 = scalar_lea.vmem [#allocation5], %s438
        %p440 = pneg %p78
        %p441 = pneg %p75
        %s442 = sand.u32 %s31, 1
        %s443 = scalar_lea.sflag [#allocation6], %s442
        %s444 = sand.u32 %s91, 1
        %s445 = scalar_lea.vmem [#allocation7], %s444
        %p446 = pneg %p104
        %p447 = pneg %p101
        %p448 = pneg %p125
        %p449 = pneg %p122
        %p450 = pneg %p146
        %p451 = pneg %p143
        %p452 = pneg %p167
        %p453 = pneg %p164
        %p454 = pneg %p188
        %p455 = pneg %p185
        %p456 = pneg %p209
        %p457 = pneg %p206
        %p458 = pneg %p230
        %p459 = pneg %p227
        %p460 = pneg %p251
        %p461 = pneg %p248
        %p462 = pneg %p272
        %p463 = pneg %p269
        %p464 = pneg %p298
        %p465 = pneg %p295
        %s466 = sand.u32 %s285, 1
        %s467 = scalar_lea.sflag [#allocation4], %s466
        %s468 = sand.u32 %s285, 1
        %s469 = smul.addr %s468, 8
        %s470 = scalar_lea.vmem [#allocation8], %s469
        %v471 = vld [vmem:[%s3] sm:$0xff]
        %v472 = vld [vmem:[%s3 + $0x8] sm:$0xff]
        %v473 = vld [vmem:[%s3 + $0x10] sm:$0xff]
        %v474 = vld [vmem:[%s3 + $0x18] sm:$0xff]
        %v475 = vld [vmem:[%s4] sm:$0x1]
        %v476 = vld [vmem:[%s5] sm:$0xff]
        %v477 = vld [vmem:[%s5 + $0x8] sm:$0xff]
        %v478 = vld [vmem:[%s5 + $0x10] sm:$0xff]
        %v479 = vld [vmem:[%s5 + $0x18] sm:$0xff]
        %v480 = vld [vmem:[%s6] sm:$0x1]
        %v481 = vld [vmem:[%s7] sm:$0xff]
        %v482 = vld [vmem:[%s7 + $0x8] sm:$0xff]
        %v483 = vld [vmem:[%s7 + $0x10] sm:$0xff]
        %v484 = vld [vmem:[%s7 + $0x18] sm:$0xff]
        %v485 = vld [vmem:[%s8] sm:$0x1]
        %v486 = vld [vmem:[%s9] sm:$0xff]
        %v487 = vld [vmem:[%s9 + $0x8] sm:$0xff]
        %v488 = vld [vmem:[%s9 + $0x10] sm:$0xff]
        %v489 = vld [vmem:[%s9 + $0x18] sm:$0xff]
        %v490 = vld [vmem:[%s9 + $0x20] sm:$0xff]
        %v491 = vld [vmem:[%s9 + $0x28] sm:$0xff]
        %v492 = vld [vmem:[%s9 + $0x30] sm:$0xff]
        %v493 = vld [vmem:[%s9 + $0x38] sm:$0xff]
        %v494 = vld [vmem:[%s10] sm:$0x1]
        %v495 = vld [vmem:[%s405] sm:$0xff]
        %v496 = vld [vmem:[%s414] sm:$0x1]
        %v497 = vld [vmem:[%s423] sm:$0x1]
        %vm498 = vcmask 261120
        %v499 = vsel %vm498, %v495, 0.0
        %v500 = vrot.slane %v499, 4
        %v501 = vadd.f32 %v499, %v500
        %v502 = vrot.slane %v501, 2
        %v503 = vadd.f32 %v501, %v502
        %v504 = vrot.slane %v503, 1
        %v505 = vadd.f32 %v503, %v504
        %v506 = vrcp.pop 8.0
        %v507 = vmul.f32 8.0, %v506
        %v508 = vsub.f32 1.0, %v507
        %v509 = vmul.f32 %v506, %v508
        %v510 = vadd.f32 %v506, %v509
        %vm511 = vweird.f32 %v506
        %v512 = vsel %vm511, %v506, %v510
        %v513 = vmul.f32 %v505, %v512
        %v514 = vsub.f32 %v495, %v513
        %v515 = vmul.f32 %v514, %v514
        %v516 = vsel %vm498, %v515, 0.0
        %v517 = vrot.slane %v516, 4
        %v518 = vadd.f32 %v516, %v517
        %v519 = vrot.slane %v518, 2
        %v520 = vadd.f32 %v518, %v519
        %v521 = vrot.slane %v520, 1
        %v522 = vadd.f32 %v520, %v521
        %v523 = vmul.f32 %v522, %v512
        %v524 = vrsqrt.pop %v523
        %v525 = vmul.f32 %v524, %v523
        %v526 = vmul.f32 %v525, %v524
        %v527 = vmul.f32 0.5, %v526
        %v528 = vsub.f32 1.5, %v527
        %v529 = vmul.f32 %v524, %v528
        %v530 = vmul.f32 %v523, %v529
        %vm531 = vcmp.eq.f32.partialorder %v523, inf
        %v532 = vsel %vm531, %v523, %v530
        %vm533 = vcmp.eq.f32.partialorder %v523, 0.0
        %v534 = vand.u32 %v523, 2147483648
        %v535 = vsel %vm533, %v534, %v532
        %v536 = vadd.f32 %v535, 1e-05
        %v537 = vrcp.pop %v536
        %v538 = vmul.f32 %v536, %v537
        %v539 = vsub.f32 1.0, %v538
        %v540 = vmul.f32 %v537, %v539
        %v541 = vadd.f32 %v537, %v540
        %vm542 = vweird.f32 %v536
        %vm543 = vweird.f32 %v537
        %vm544 = vmor %vm542, %vm543
        %v545 = vsel %vm544, %v537, %v541
        %v546 = vand.u32 2147483647, %v536
        %vm547 = vcmp.eq.f32.partialorder %v546, 8.507059e+37
        %v548 = vand.u32 %v536, 2147483648
        %v549 = vor.u32 1.1754944e-38, %v548
        %v550 = vsel %vm547, %v549, %v545
        %v551 = vmul.f32 %v514, %v550
        %v553 = vperm.slane %v497, 0
        %v555 = vmul.f32 %v553, %v551
        %v557 = vperm.slane %v496, 0
        %v559 = vadd.f32 %v555, %v557
        %v561 = vperm.slane %v475, 0
        %v564 = vsel %vm498, %v559, 0
        %566 = vmatpush.msra.mxu0 0.0
        %567 = vmatpush.msra.mxu0 0.0
        %568 = vmatpush.msra.mxu0 0.0
        %569 = vmatpush.msra.mxu0 0.0
        %570 = vmatpush.msra.mxu0 0.0
        %571 = vmatpush.msra.mxu0 0.0
        %572 = vmatpush.msra.mxu0 0.0
        %573 = vmatpush.msra.mxu0 0.0
        %574 = vmatpush.msra.mxu0 0.0
        %575 = vmatpush.msra.mxu0 0.0
        %576 = vmatpush.msra.mxu0 0.0
        %577 = vmatpush.msra.mxu0 0.0
        %578 = vmatpush.msra.mxu0 %v474
        %579 = vmatpush.msra.mxu0 %v473
        %580 = vmatpush.msra.mxu0 %v472
        %581 = vmatpush.msra.mxu0 %v471
        %582 = vmatmul.f32.gmra.mxu0 %v564
        %v583 = vpop.f32.mrf.mxu0
        %v584 = vadd.f32 %v561, %v583
        %585 = vdwg.mxu0
        %587 = vrot.lane.b32.xlu0 %v584, 96
        %v588 = vpop.permute.xlu0 %587
        %vm589 = vcmask 64512
        %v590 = vsel %vm589, %v584, 0
        %v592 = vsel %vm589, %v588, 0
        %594 = vmatpush.xpose.msra.mxu0 0.0
        %595 = vmatpush.xpose.msra.mxu0 0.0
        %596 = vmatpush.xpose.msra.mxu0 0.0
        %597 = vmatpush.xpose.msra.mxu0 0.0
        %598 = vmatpush.xpose.msra.mxu0 0.0
        %599 = vmatpush.xpose.msra.mxu0 0.0
        %600 = vmatpush.xpose.msra.mxu0 0.0
        %601 = vmatpush.xpose.msra.mxu0 0.0
        %602 = vmatpush.xpose.msra.mxu0 0.0
        %603 = vmatpush.xpose.msra.mxu0 0.0
        %604 = vmatpush.xpose.msra.mxu0 0.0
        %605 = vmatpush.xpose.msra.mxu0 0.0
        %606 = vmatpush.xpose.msra.mxu0 0.0
        %607 = vmatpush.xpose.msra.mxu0 0.0
        %608 = vmatpush.xpose.msra.mxu0 0.0
        %609 = vmatpush.xpose.msra.mxu0 %v592
        %610 = vmatmul.f32.gmra.mxu0 %v590
        %v611 = vpop.f32.mrf.mxu0
        %v612 = vadd.f32 0.0, %v611
        %613 = vdwg.mxu0
        %v614 = vmul.f32 %v612, 0.35355338
        %v615 = vsel %vm589, %v614, -inf
        %616 = vmax.xlane.f32.xlu0 %v615
        %v617 = vpop.xlane.xlu0 %616
        %v618 = vsub.f32 %v614, %v617
        %v619 = vmul.f32 %v618, 1.442695
        %v620 = vpow.pop %v619
        %v621 = vsel %vm589, %v620, 0.0
        %622 = vadd.xlane.f32.xlu0 %v621
        %v623 = vpop.xlane.xlu0 %622
        %v624 = vrcp.pop %v623
        %v625 = vmul.f32 %v623, %v624
        %v626 = vsub.f32 1.0, %v625
        %v627 = vmul.f32 %v624, %v626
        %v628 = vadd.f32 %v624, %v627
        %vm629 = vweird.f32 %v623
        %vm630 = vweird.f32 %v624
        %vm631 = vmor %vm629, %vm630
        %v632 = vsel %vm631, %v624, %v628
        %v633 = vand.u32 2147483647, %v623
        %vm634 = vcmp.eq.f32.partialorder %v633, 8.507059e+37
        %v635 = vand.u32 %v623, 2147483648
        %v636 = vor.u32 1.1754944e-38, %v635
        %v637 = vsel %vm634, %v636, %v632
        %v638 = vmul.f32 %v620, %v637
        %639 = vrot.lane.b32.xlu0 %v584, 64
        %v640 = vpop.permute.xlu0 %639
        %v643 = vsel %vm589, %v638, 0
        %645 = vmatpush.msra.mxu0 0.0
        %646 = vmatpush.msra.mxu0 0.0
        %647 = vmatpush.msra.mxu0 0.0
        %648 = vmatpush.msra.mxu0 0.0
        %649 = vmatpush.msra.mxu0 0.0
        %650 = vmatpush.msra.mxu0 0.0
        %651 = vmatpush.msra.mxu0 0.0
        %652 = vmatpush.msra.mxu0 0.0
        %653 = vmatpush.msra.mxu0 0.0
        %654 = vmatpush.msra.mxu0 0.0
        %655 = vmatpush.msra.mxu0 0.0
        %656 = vmatpush.msra.mxu0 0.0
        %657 = vmatpush.msra.mxu0 0.0
        %658 = vmatpush.msra.mxu0 0.0
        %659 = vmatpush.msra.mxu0 0.0
        %660 = vmatpush.msra.mxu0 %v640
        %661 = vmatmul.f32.gmra.mxu0 %v643
        %v662 = vpop.f32.mrf.mxu0
        %v663 = vadd.f32 0.0, %v662
        %664 = vdwg.mxu0
        %665 = vrot.lane.b32.xlu0 %v584, 120
        %v666 = vpop.permute.xlu0 %665
        %667 = vrot.lane.b32.xlu0 %v584, 88
        %v668 = vpop.permute.xlu0 %667
        %v669 = vsel %vm589, %v666, 0
        %v671 = vsel %vm589, %v668, 0
        %673 = vmatpush.xpose.msra.mxu0 0.0
        %674 = vmatpush.xpose.msra.mxu0 0.0
        %675 = vmatpush.xpose.msra.mxu0 0.0
        %676 = vmatpush.xpose.msra.mxu0 0.0
        %677 = vmatpush.xpose.msra.mxu0 0.0
        %678 = vmatpush.xpose.msra.mxu0 0.0
        %679 = vmatpush.xpose.msra.mxu0 0.0
        %680 = vmatpush.xpose.msra.mxu0 0.0
        %681 = vmatpush.xpose.msra.mxu0 0.0
        %682 = vmatpush.xpose.msra.mxu0 0.0
        %683 = vmatpush.xpose.msra.mxu0 0.0
        %684 = vmatpush.xpose.msra.mxu0 0.0
        %685 = vmatpush.xpose.msra.mxu0 0.0
        %686 = vmatpush.xpose.msra.mxu0 0.0
        %687 = vmatpush.xpose.msra.mxu0 0.0
        %688 = vmatpush.xpose.msra.mxu0 %v671
        %689 = vmatmul.f32.gmra.mxu0 %v669
        %v690 = vpop.f32.mrf.mxu0
        %v691 = vadd.f32 0.0, %v690
        %692 = vdwg.mxu0
        %v693 = vmul.f32 %v691, 0.35355338
        %v694 = vsel %vm589, %v693, -inf
        %695 = vmax.xlane.f32.xlu0 %v694
        %v696 = vpop.xlane.xlu0 %695
        %v697 = vsub.f32 %v693, %v696
        %v698 = vmul.f32 %v697, 1.442695
        %v699 = vpow.pop %v698
        %v700 = vsel %vm589, %v699, 0.0
        %701 = vadd.xlane.f32.xlu0 %v700
        %v702 = vpop.xlane.xlu0 %701
        %v703 = vrcp.pop %v702
        %v704 = vmul.f32 %v702, %v703
        %v705 = vsub.f32 1.0, %v704
        %v706 = vmul.f32 %v703, %v705
        %v707 = vadd.f32 %v703, %v706
        %vm708 = vweird.f32 %v702
        %vm709 = vweird.f32 %v703
        %vm710 = vmor %vm708, %vm709
        %v711 = vsel %vm710, %v703, %v707
        %v712 = vand.u32 2147483647, %v702
        %vm713 = vcmp.eq.f32.partialorder %v712, 8.507059e+37
        %v714 = vand.u32 %v702, 2147483648
        %v715 = vor.u32 1.1754944e-38, %v714
        %v716 = vsel %vm713, %v715, %v711
        %v717 = vmul.f32 %v699, %v716
        %718 = vrot.lane.b32.xlu0 %v584, 56
        %v719 = vpop.permute.xlu0 %718
        %v722 = vsel %vm589, %v717, 0
        %724 = vmatpush.msra.mxu0 0.0
        %725 = vmatpush.msra.mxu0 0.0
        %726 = vmatpush.msra.mxu0 0.0
        %727 = vmatpush.msra.mxu0 0.0
        %728 = vmatpush.msra.mxu0 0.0
        %729 = vmatpush.msra.mxu0 0.0
        %730 = vmatpush.msra.mxu0 0.0
        %731 = vmatpush.msra.mxu0 0.0
        %732 = vmatpush.msra.mxu0 0.0
        %733 = vmatpush.msra.mxu0 0.0
        %734 = vmatpush.msra.mxu0 0.0
        %735 = vmatpush.msra.mxu0 0.0
        %736 = vmatpush.msra.mxu0 0.0
        %737 = vmatpush.msra.mxu0 0.0
        %738 = vmatpush.msra.mxu0 0.0
        %739 = vmatpush.msra.mxu0 %v719
        %740 = vmatmul.f32.gmra.mxu0 %v722
        %v741 = vpop.f32.mrf.mxu0
        %v742 = vadd.f32 0.0, %v741
        %743 = vdwg.mxu0
        %v745 = vsel %vm589, %v742, 0
        %747 = vmatpush.msra.mxu0 0.0
        %748 = vmatpush.msra.mxu0 0.0
        %749 = vmatpush.msra.mxu0 0.0
        %750 = vmatpush.msra.mxu0 0.0
        %751 = vmatpush.msra.mxu0 0.0
        %752 = vmatpush.msra.mxu0 0.0
        %753 = vmatpush.msra.mxu0 0.0
        %754 = vmatpush.msra.mxu0 0.0
        %755 = vmatpush.msra.mxu0 0.0
        %756 = vmatpush.msra.mxu0 0.0
        %757 = vmatpush.msra.mxu0 0.0
        %758 = vmatpush.msra.mxu0 0.0
        %759 = vmatpush.msra.mxu0 0.0
        %760 = vmatpush.msra.mxu0 0.0
        %761 = vmatpush.msra.mxu0 0.0
        %762 = vmatpush.msra.mxu0 %v477
        %763 = vmatmul.f32.gmra.mxu0 %v745
        %v764 = vpop.f32.mrf.mxu0
        %v765 = vadd.f32 0.0, %v764
        %766 = vdwg.mxu0
        %v768 = vsel %vm589, %v663, 0
        %770 = vmatpush.msra.mxu0 0.0
        %771 = vmatpush.msra.mxu0 0.0
        %772 = vmatpush.msra.mxu0 0.0
        %773 = vmatpush.msra.mxu0 0.0
        %774 = vmatpush.msra.mxu0 0.0
        %775 = vmatpush.msra.mxu0 0.0
        %776 = vmatpush.msra.mxu0 0.0
        %777 = vmatpush.msra.mxu0 0.0
        %778 = vmatpush.msra.mxu0 0.0
        %779 = vmatpush.msra.mxu0 0.0
        %780 = vmatpush.msra.mxu0 0.0
        %781 = vmatpush.msra.mxu0 0.0
        %782 = vmatpush.msra.mxu0 0.0
        %783 = vmatpush.msra.mxu0 0.0
        %784 = vmatpush.msra.mxu0 0.0
        %785 = vmatpush.msra.mxu0 %v476
        %786 = vmatmul.f32.gmra.mxu0 %v768
        %v787 = vpop.f32.mrf.mxu0
        %v788 = vadd.f32 %v765, %v787
        %789 = vdwg.mxu0
        %790 = vrot.lane.b32.xlu0 %v584, 112
        %v791 = vpop.permute.xlu0 %790
        %792 = vrot.lane.b32.xlu0 %v584, 80
        %v793 = vpop.permute.xlu0 %792
        %v794 = vsel %vm589, %v791, 0
        %v796 = vsel %vm589, %v793, 0
        %798 = vmatpush.xpose.msra.mxu0 0.0
        %799 = vmatpush.xpose.msra.mxu0 0.0
        %800 = vmatpush.xpose.msra.mxu0 0.0
        %801 = vmatpush.xpose.msra.mxu0 0.0
        %802 = vmatpush.xpose.msra.mxu0 0.0
        %803 = vmatpush.xpose.msra.mxu0 0.0
        %804 = vmatpush.xpose.msra.mxu0 0.0
        %805 = vmatpush.xpose.msra.mxu0 0.0
        %806 = vmatpush.xpose.msra.mxu0 0.0
        %807 = vmatpush.xpose.msra.mxu0 0.0
        %808 = vmatpush.xpose.msra.mxu0 0.0
        %809 = vmatpush.xpose.msra.mxu0 0.0
        %810 = vmatpush.xpose.msra.mxu0 0.0
        %811 = vmatpush.xpose.msra.mxu0 0.0
        %812 = vmatpush.xpose.msra.mxu0 0.0
        %813 = vmatpush.xpose.msra.mxu0 %v796
        %814 = vmatmul.f32.gmra.mxu0 %v794
        %v815 = vpop.f32.mrf.mxu0
        %v816 = vadd.f32 0.0, %v815
        %817 = vdwg.mxu0
        %v818 = vmul.f32 %v816, 0.35355338
        %v819 = vsel %vm589, %v818, -inf
        %820 = vmax.xlane.f32.xlu0 %v819
        %v821 = vpop.xlane.xlu0 %820
        %v822 = vsub.f32 %v818, %v821
        %v823 = vmul.f32 %v822, 1.442695
        %v824 = vpow.pop %v823
        %v825 = vsel %vm589, %v824, 0.0
        %826 = vadd.xlane.f32.xlu0 %v825
        %v827 = vpop.xlane.xlu0 %826
        %v828 = vrcp.pop %v827
        %v829 = vmul.f32 %v827, %v828
        %v830 = vsub.f32 1.0, %v829
        %v831 = vmul.f32 %v828, %v830
        %v832 = vadd.f32 %v828, %v831
        %vm833 = vweird.f32 %v827
        %vm834 = vweird.f32 %v828
        %vm835 = vmor %vm833, %vm834
        %v836 = vsel %vm835, %v828, %v832
        %v837 = vand.u32 2147483647, %v827
        %vm838 = vcmp.eq.f32.partialorder %v837, 8.507059e+37
        %v839 = vand.u32 %v827, 2147483648
        %v840 = vor.u32 1.1754944e-38, %v839
        %v841 = vsel %vm838, %v840, %v836
        %v842 = vmul.f32 %v824, %v841
        %843 = vrot.lane.b32.xlu0 %v584, 48
        %v844 = vpop.permute.xlu0 %843
        %v847 = vsel %vm589, %v842, 0
        %849 = vmatpush.msra.mxu0 0.0
        %850 = vmatpush.msra.mxu0 0.0
        %851 = vmatpush.msra.mxu0 0.0
        %852 = vmatpush.msra.mxu0 0.0
        %853 = vmatpush.msra.mxu0 0.0
        %854 = vmatpush.msra.mxu0 0.0
        %855 = vmatpush.msra.mxu0 0.0
        %856 = vmatpush.msra.mxu0 0.0
        %857 = vmatpush.msra.mxu0 0.0
        %858 = vmatpush.msra.mxu0 0.0
        %859 = vmatpush.msra.mxu0 0.0
        %860 = vmatpush.msra.mxu0 0.0
        %861 = vmatpush.msra.mxu0 0.0
        %862 = vmatpush.msra.mxu0 0.0
        %863 = vmatpush.msra.mxu0 0.0
        %864 = vmatpush.msra.mxu0 %v844
        %865 = vmatmul.f32.gmra.mxu0 %v847
        %v866 = vpop.f32.mrf.mxu0
        %v867 = vadd.f32 0.0, %v866
        %868 = vdwg.mxu0
        %v870 = vsel %vm589, %v867, 0
        %872 = vmatpush.msra.mxu0 0.0
        %873 = vmatpush.msra.mxu0 0.0
        %874 = vmatpush.msra.mxu0 0.0
        %875 = vmatpush.msra.mxu0 0.0
        %876 = vmatpush.msra.mxu0 0.0
        %877 = vmatpush.msra.mxu0 0.0
        %878 = vmatpush.msra.mxu0 0.0
        %879 = vmatpush.msra.mxu0 0.0
        %880 = vmatpush.msra.mxu0 0.0
        %881 = vmatpush.msra.mxu0 0.0
        %882 = vmatpush.msra.mxu0 0.0
        %883 = vmatpush.msra.mxu0 0.0
        %884 = vmatpush.msra.mxu0 0.0
        %885 = vmatpush.msra.mxu0 0.0
        %886 = vmatpush.msra.mxu0 0.0
        %887 = vmatpush.msra.mxu0 %v478
        %888 = vmatmul.f32.gmra.mxu0 %v870
        %v889 = vpop.f32.mrf.mxu0
        %v890 = vadd.f32 0.0, %v889
        %891 = vdwg.mxu0
        %v892 = vadd.f32 %v788, %v890
        %893 = vrot.lane.b32.xlu0 %v584, 104
        %v894 = vpop.permute.xlu0 %893
        %895 = vrot.lane.b32.xlu0 %v584, 72
        %v896 = vpop.permute.xlu0 %895
        %v897 = vsel %vm589, %v894, 0
        %v899 = vsel %vm589, %v896, 0
        %901 = vmatpush.xpose.msra.mxu0 0.0
        %902 = vmatpush.xpose.msra.mxu0 0.0
        %903 = vmatpush.xpose.msra.mxu0 0.0
        %904 = vmatpush.xpose.msra.mxu0 0.0
        %905 = vmatpush.xpose.msra.mxu0 0.0
        %906 = vmatpush.xpose.msra.mxu0 0.0
        %907 = vmatpush.xpose.msra.mxu0 0.0
        %908 = vmatpush.xpose.msra.mxu0 0.0
        %909 = vmatpush.xpose.msra.mxu0 0.0
        %910 = vmatpush.xpose.msra.mxu0 0.0
        %911 = vmatpush.xpose.msra.mxu0 0.0
        %912 = vmatpush.xpose.msra.mxu0 0.0
        %913 = vmatpush.xpose.msra.mxu0 0.0
        %914 = vmatpush.xpose.msra.mxu0 0.0
        %915 = vmatpush.xpose.msra.mxu0 0.0
        %916 = vmatpush.xpose.msra.mxu0 %v899
        %917 = vmatmul.f32.gmra.mxu0 %v897
        %v918 = vpop.f32.mrf.mxu0
        %v919 = vadd.f32 0.0, %v918
        %920 = vdwg.mxu0
        %v921 = vmul.f32 %v919, 0.35355338
        %v922 = vsel %vm589, %v921, -inf
        %923 = vmax.xlane.f32.xlu0 %v922
        %v924 = vpop.xlane.xlu0 %923
        %v925 = vsub.f32 %v921, %v924
        %v926 = vmul.f32 %v925, 1.442695
        %v927 = vpow.pop %v926
        %v928 = vsel %vm589, %v927, 0.0
        %929 = vadd.xlane.f32.xlu0 %v928
        %v930 = vpop.xlane.xlu0 %929
        %v931 = vrcp.pop %v930
        %v932 = vmul.f32 %v930, %v931
        %v933 = vsub.f32 1.0, %v932
        %v934 = vmul.f32 %v931, %v933
        %v935 = vadd.f32 %v931, %v934
        %vm936 = vweird.f32 %v930
        %vm937 = vweird.f32 %v931
        %vm938 = vmor %vm936, %vm937
        %v939 = vsel %vm938, %v931, %v935
        %v940 = vand.u32 2147483647, %v930
        %vm941 = vcmp.eq.f32.partialorder %v940, 8.507059e+37
        %v942 = vand.u32 %v930, 2147483648
        %v943 = vor.u32 1.1754944e-38, %v942
        %v944 = vsel %vm941, %v943, %v939
        %v945 = vmul.f32 %v927, %v944
        %946 = vrot.lane.b32.xlu0 %v584, 40
        %v947 = vpop.permute.xlu0 %946
        %v950 = vsel %vm589, %v945, 0
        %952 = vmatpush.msra.mxu0 0.0
        %953 = vmatpush.msra.mxu0 0.0
        %954 = vmatpush.msra.mxu0 0.0
        %955 = vmatpush.msra.mxu0 0.0
        %956 = vmatpush.msra.mxu0 0.0
        %957 = vmatpush.msra.mxu0 0.0
        %958 = vmatpush.msra.mxu0 0.0
        %959 = vmatpush.msra.mxu0 0.0
        %960 = vmatpush.msra.mxu0 0.0
        %961 = vmatpush.msra.mxu0 0.0
        %962 = vmatpush.msra.mxu0 0.0
        %963 = vmatpush.msra.mxu0 0.0
        %964 = vmatpush.msra.mxu0 0.0
        %965 = vmatpush.msra.mxu0 0.0
        %966 = vmatpush.msra.mxu0 0.0
        %967 = vmatpush.msra.mxu0 %v947
        %968 = vmatmul.f32.gmra.mxu0 %v950
        %v969 = vpop.f32.mrf.mxu0
        %v970 = vadd.f32 0.0, %v969
        %971 = vdwg.mxu0
        %v973 = vsel %vm589, %v970, 0
        %975 = vmatpush.msra.mxu0 0.0
        %976 = vmatpush.msra.mxu0 0.0
        %977 = vmatpush.msra.mxu0 0.0
        %978 = vmatpush.msra.mxu0 0.0
        %979 = vmatpush.msra.mxu0 0.0
        %980 = vmatpush.msra.mxu0 0.0
        %981 = vmatpush.msra.mxu0 0.0
        %982 = vmatpush.msra.mxu0 0.0
        %983 = vmatpush.msra.mxu0 0.0
        %984 = vmatpush.msra.mxu0 0.0
        %985 = vmatpush.msra.mxu0 0.0
        %986 = vmatpush.msra.mxu0 0.0
        %987 = vmatpush.msra.mxu0 0.0
        %988 = vmatpush.msra.mxu0 0.0
        %989 = vmatpush.msra.mxu0 0.0
        %990 = vmatpush.msra.mxu0 %v479
        %991 = vmatmul.f32.gmra.mxu0 %v973
        %v992 = vpop.f32.mrf.mxu0
        %v993 = vadd.f32 0.0, %v992
        %994 = vdwg.mxu0
        %v995 = vadd.f32 %v892, %v993
        %v996 = vadd.f32 %v495, %v995
        %v998 = vperm.slane %v480, 0
        %v1000 = vadd.f32 %v996, %v998
        %v1001 = vsel %vm498, %v1000, 0.0
        %v1002 = vrot.slane %v1001, 4
        %v1003 = vadd.f32 %v1001, %v1002
        %v1004 = vrot.slane %v1003, 2
        %v1005 = vadd.f32 %v1003, %v1004
        %v1006 = vrot.slane %v1005, 1
        %v1007 = vadd.f32 %v1005, %v1006
        %v1008 = vmul.f32 %v1007, %v512
        %v1009 = vsub.f32 %v1000, %v1008
        %v1010 = vmul.f32 %v1009, %v1009
        %v1011 = vsel %vm498, %v1010, 0.0
        %v1012 = vrot.slane %v1011, 4
        %v1013 = vadd.f32 %v1011, %v1012
        %v1014 = vrot.slane %v1013, 2
        %v1015 = vadd.f32 %v1013, %v1014
        %v1016 = vrot.slane %v1015, 1
        %v1017 = vadd.f32 %v1015, %v1016
        %v1018 = vmul.f32 %v1017, %v512
        %v1019 = vrsqrt.pop %v1018
        %v1020 = vmul.f32 %v1019, %v1018
        %v1021 = vmul.f32 %v1020, %v1019
        %v1022 = vmul.f32 0.5, %v1021
        %v1023 = vsub.f32 1.5, %v1022
        %v1024 = vmul.f32 %v1019, %v1023
        %v1025 = vmul.f32 %v1018, %v1024
        %vm1026 = vcmp.eq.f32.partialorder %v1018, inf
        %v1027 = vsel %vm1026, %v1018, %v1025
        %vm1028 = vcmp.eq.f32.partialorder %v1018, 0.0
        %v1029 = vand.u32 %v1018, 2147483648
        %v1030 = vsel %vm1028, %v1029, %v1027
        %v1031 = vadd.f32 %v1030, 1e-05
        %v1032 = vrcp.pop %v1031
        %v1033 = vmul.f32 %v1031, %v1032
        %v1034 = vsub.f32 1.0, %v1033
        %v1035 = vmul.f32 %v1032, %v1034
        %v1036 = vadd.f32 %v1032, %v1035
        %vm1037 = vweird.f32 %v1031
        %vm1038 = vweird.f32 %v1032
        %vm1039 = vmor %vm1037, %vm1038
        %v1040 = vsel %vm1039, %v1032, %v1036
        %v1041 = vand.u32 2147483647, %v1031
        %vm1042 = vcmp.eq.f32.partialorder %v1041, 8.507059e+37
        %v1043 = vand.u32 %v1031, 2147483648
        %v1044 = vor.u32 1.1754944e-38, %v1043
        %v1045 = vsel %vm1042, %v1044, %v1040
        %v1046 = vmul.f32 %v1009, %v1045
        %v1047 = vmul.f32 %v553, %v1046
        %v1048 = vadd.f32 %v1047, %v557
        %v1050 = vperm.slane %v485, 0
        %v1053 = vsel %vm498, %v1048, 0
        %1055 = vmatpush.msra.mxu0 0.0
        %1056 = vmatpush.msra.mxu0 0.0
        %1057 = vmatpush.msra.mxu0 0.0
        %1058 = vmatpush.msra.mxu0 0.0
        %1059 = vmatpush.msra.mxu0 0.0
        %1060 = vmatpush.msra.mxu0 0.0
        %1061 = vmatpush.msra.mxu0 0.0
        %1062 = vmatpush.msra.mxu0 0.0
        %1063 = vmatpush.msra.mxu0 0.0
        %1064 = vmatpush.msra.mxu0 0.0
        %1065 = vmatpush.msra.mxu0 0.0
        %1066 = vmatpush.msra.mxu0 0.0
        %1067 = vmatpush.msra.mxu0 %v484
        %1068 = vmatpush.msra.mxu0 %v483
        %1069 = vmatpush.msra.mxu0 %v482
        %1070 = vmatpush.msra.mxu0 %v481
        %1071 = vmatmul.f32.gmra.mxu0 %v1053
        %v1072 = vpop.f32.mrf.mxu0
        %v1073 = vadd.f32 %v1050, %v1072
        %1074 = vdwg.mxu0
        %v1075 = vmax.f32 %v1073, 0.0
        %v1077 = vperm.slane %v494, 0
        %vm1079 = vcmask 523264
        %v1081 = vsel %vm1079, %v1075, 0
        %1083 = vmatpush.msra.mxu0 0.0
        %1084 = vmatpush.msra.mxu0 0.0
        %1085 = vmatpush.msra.mxu0 0.0
        %1086 = vmatpush.msra.mxu0 0.0
        %1087 = vmatpush.msra.mxu0 0.0
        %1088 = vmatpush.msra.mxu0 0.0
        %1089 = vmatpush.msra.mxu0 0.0
        %1090 = vmatpush.msra.mxu0 0.0
        %1091 = vmatpush.msra.mxu0 %v493
        %1092 = vmatpush.msra.mxu0 %v492
        %1093 = vmatpush.msra.mxu0 %v491
        %1094 = vmatpush.msra.mxu0 %v490
        %1095 = vmatpush.msra.mxu0 %v489
        %1096 = vmatpush.msra.mxu0 %v488
        %1097 = vmatpush.msra.mxu0 %v487
        %1098 = vmatpush.msra.mxu0 %v486
        %1099 = vmatmul.f32.gmra.mxu0 %v1081
        %v1100 = vpop.f32.mrf.mxu0
        %v1101 = vadd.f32 %v1077, %v1100
        %1102 = vdwg.mxu0
        %v1103 = vadd.f32 %v1000, %v1101
        %1104 = vst.msk [vmem:[%s470] sm:$0xff] %vm498, %v1103
        %s1105 = sand.u32 %s285, 1
        %s1106 = scalar_lea.sflag [#allocation4], %s1105
        %s1107 = sand.u32 %s285, 1
        %s1108 = smul.addr %s1107, 8
        %s1109 = scalar_lea.vmem [#allocation8], %s1108
        // Predicated region
        $region77: #{tpu_custom_call.1} parent=63 // pred_check
          %p1110 = pneg %p295
        $region78: #{tpu_custom_call.1} parent=63 // pred_check_branch
          %1112 = sbr.rel (%p1110) target = $region80
        $region79: #{tpu_custom_call.1} parent=63 // pred_region
          %1114 = vsyncadd %s1106, 0
          %s1115 = smul.addr %s31, 8
          %s1116 = scalar_lea.hbm %s11, %s1115
          %s1118 = sshll.u32 %s1109, 4
          %s1119 = int_to_ptr.vmem [resolvable:$true] %s1118
          %s1120 = sshll.u32 %s1116, 4
          %s1121 = int_to_ptr.hbm [resolvable:$true] %s1120
          %1123 = dma.vmem_to_hbm [thread:$0]  %s1119, 128, %s1121, %s1106
        $region80: #{tpu_custom_call.1} parent=63 // pred_fallthru
          _
      $region64: #{tpu_custom_call.1} parent=5 // pred_fallthru
        _
      %p1124 = scmp.le.s32.totalorder 2, %s26
      // Predicated region
      $region81: #{tpu_custom_call.1} parent=5 // pred_check
        %p1125 = pneg %p1124
      $region82: #{tpu_custom_call.1} parent=5 // pred_check_branch
        %1127 = sbr.rel (%p1125) target = $region84
      $region83: #{tpu_custom_call.1} parent=5 // pred_region
        %s1128 = ssub.s32 %s26, 2
        // Predicated region
        $region85: #{tpu_custom_call.1} parent=83 // pred_check
          %p1129 = pneg %p301
        $region86: #{tpu_custom_call.1} parent=83 // pred_check_branch
          %1131 = sbr.rel (%p1129) target = $region88
        $region87: #{tpu_custom_call.1} parent=83 // pred_region
          %s1132 = sand.u32 %s286, 1
          %s1133 = scalar_lea.sflag [#allocation4], %s1132
          %s1134 = sand.u32 %s286, 1
          %s1135 = smul.addr %s1134, 8
          %s1136 = scalar_lea.vmem [#allocation8], %s1135
          %1138 = dma.done %s1133, 128
        $region88: #{tpu_custom_call.1} parent=83 // pred_fallthru
          _
      $region84: #{tpu_custom_call.1} parent=5 // pred_fallthru
        _
    $region6: #{tpu_custom_call.1} parent=1 // loop_footer
      %s30 = sadd.s32 1, %s26
    $region7: #{tpu_custom_call.1} parent=1 // loop_footer_branch
      %25 = sbr.rel target = $region3
    $region8: #{tpu_custom_call.1} parent=1 // loop_exit
      _
    %1139 = vsyncpa [#allocation3], 1
    %s1140 = scalar_lea.sflag [#allocation3], 1
    %1141 = vsyncpa %s1140, 1
    %1142 = vsyncpa [#allocation6], 1
    %s1143 = scalar_lea.sflag [#allocation6], 1
    %1144 = vsyncpa %s1143, 1
    %1145 = vsyncpa [#allocation4], 1
    %s1146 = scalar_lea.sflag [#allocation4], 1
    %1147 = vsyncpa %s1146, 1

</llo_original>
